<compile_context>
chip_gen: v7x
topology: tpu7x:2x2x1
jax: 0.10.0
libtpu: 0.0.40
codegen_flags: <defaults>
</compile_context>

<pallas_src>
import functools

import jax
import jax.numpy as jnp
from jax.experimental import pallas as pl
from jax.experimental.pallas import tpu as pltpu

_H1, _H2, _H3 = 512, 64, 16


def _dqn_kernel(x_ref, w1_ref, w2_ref, w3_ref, w4_ref, b_ref, o_ref):
    """Fused forward: relu(relu(relu(x@W1+b1)@W2+b2)@W3+b3)@W4+b4 for one batch tile."""
    out_size = o_ref.shape[-1]

    # bf16 MXU matmuls with f32 accumulation.
    x = x_ref[...].astype(jnp.bfloat16)

    # Layer 1: largest intermediate (tb, 512) -> bf16 bias/ReLU epilogue.
    h1 = jnp.dot(x, w1_ref[...], preferred_element_type=jnp.float32)
    b1 = b_ref[0:1, :_H1].astype(jnp.bfloat16)
    h1 = jnp.maximum(h1.astype(jnp.bfloat16) + b1, 0.0)          # bf16 VPU

    # Layers 2-3: tiny intermediates, f32 epilogue.
    h2 = jnp.dot(h1, w2_ref[...], preferred_element_type=jnp.float32)
    h2 = jnp.maximum(h2 + b_ref[1:2, :_H2], 0.0)

    h3 = jnp.dot(h2.astype(jnp.bfloat16), w3_ref[...],
                 preferred_element_type=jnp.float32)
    h3 = jnp.maximum(h3 + b_ref[2:3, :_H3], 0.0)

    # Layer 4: full f32 (K=16, N=out is negligible work) for Q-value accuracy.
    h4 = jnp.dot(h3, w4_ref[...], preferred_element_type=jnp.float32)
    h4 = h4 + b_ref[3:4, :out_size]

    o_ref[...] = h4.astype(o_ref.dtype)


def _round_up(n, m):
    return ((n + m - 1) // m) * m


def _choose_tb(batch, block_batch):
    """Batch tile: bf16-sublane (16) / MXU-pass (256) aligned; >=2 grid steps when big."""
    if batch <= 256:
        return min(_round_up(batch, 16), _round_up(block_batch, 16))
    # Keep at least 2 grid steps so the "parallel" batch axis can be split
    # across both TensorCores on v7x.
    tb = min(block_batch, _round_up(pl.cdiv(batch, 2), 256))
    return _round_up(tb, 16)


def prepare_params(params):
    """One-time preprocessing (do NOT call per forward):

    - transpose PyTorch (out, in) weights to (in, out); cast hidden layers to
      bf16 (MXU), keep the tiny final layer in f32,
    - pack the four biases into one zero-padded (4, 512) f32 array.
    """
    out_size = params["b4"].shape[0]
    assert out_size <= _H1, (
        f"output_size={out_size} exceeds packed-bias width {_H1}")

    w1 = jnp.asarray(params["w1"]).T.astype(jnp.bfloat16)   # (in, 512)
    w2 = jnp.asarray(params["w2"]).T.astype(jnp.bfloat16)   # (512, 64)
    w3 = jnp.asarray(params["w3"]).T.astype(jnp.bfloat16)   # (64, 16)
    w4 = jnp.asarray(params["w4"]).T.astype(jnp.float32)    # (16, out), f32

    b = jnp.zeros((4, _H1), jnp.float32)
    b = b.at[0, :_H1].set(jnp.asarray(params["b1"], jnp.float32))
    b = b.at[1, :_H2].set(jnp.asarray(params["b2"], jnp.float32))
    b = b.at[2, :_H3].set(jnp.asarray(params["b3"], jnp.float32))
    b = b.at[3, :out_size].set(jnp.asarray(params["b4"], jnp.float32))

    return {"w1": w1, "w2": w2, "w3": w3, "w4": w4, "b": b}


@functools.partial(jax.jit, static_argnames=("block_batch",))
def dqn_forward(x, prepared, *, block_batch=1024):
    """x: [B, input_size] f32; prepared: output of prepare_params()."""
    B, in_size = x.shape
    out_size = prepared["w4"].shape[1]

    tb = _choose_tb(B, block_batch)
    grid = (pl.cdiv(B, tb),)

    w1, w2, w3, w4, b = (prepared["w1"], prepared["w2"], prepared["w3"],
                         prepared["w4"], prepared["b"])

    # Constant-index operands: single-buffered (fetched once, VMEM-resident).
    resident = functools.partial(pl.BlockSpec, index_map=lambda i: (0, 0),
                                 pipeline_mode=pl.Buffered(1))

    return pl.pallas_call(
        _dqn_kernel,
        out_shape=jax.ShapeDtypeStruct((B, out_size), x.dtype),
        grid=grid,
        in_specs=[
            # Batch-tiled activation input (pipelined across grid steps).
            pl.BlockSpec((tb, in_size), lambda i: (i, 0)),
            resident(w1.shape),
            resident(w2.shape),
            resident(w3.shape),
            resident(w4.shape),
            resident(b.shape),
        ],
        out_specs=pl.BlockSpec((tb, out_size), lambda i: (i, 0)),
        compiler_params=pltpu.CompilerParams(
            dimension_semantics=("parallel",),
            vmem_limit_bytes=32 * 1024 * 1024),
    )(x, w1, w2, w3, w4, b)


def init_params(key, input_size, output_size):
    """Deterministic init mimicking PyTorch Linear default (uniform ±1/sqrt(fan_in))."""
    dims = [(_H1, input_size), (_H2, _H1), (_H3, _H2), (output_size, _H3)]
    params = {}
    for i, (out_d, in_d) in enumerate(dims, start=1):
        key, kw, kb = jax.random.split(key, 3)
        bound = 1.0 / jnp.sqrt(jnp.float32(in_d))
        params[f"w{i}"] = jax.random.uniform(
            kw, (out_d, in_d), jnp.float32, minval=-bound, maxval=bound)
        params[f"b{i}"] = jax.random.uniform(
            kb, (out_d,), jnp.float32, minval=-bound, maxval=bound)
    return params


def reference_forward(x, params):
    """Pure-JAX f32 reference identical to the PyTorch forward semantics."""
    h = jnp.maximum(x @ params["w1"].T + params["b1"], 0.0)
    h = jnp.maximum(h @ params["w2"].T + params["b2"], 0.0)
    h = jnp.maximum(h @ params["w3"].T + params["b3"], 0.0)
    return h @ params["w4"].T + params["b4"]


if __name__ == "__main__":
    key = jax.random.PRNGKey(0)
    input_size = 32
    output_size = 8
    batch = 512  # -> tb=256, grid=(2,): exercises tiling and >=2 parallel steps

    kp, kx = jax.random.split(key)
    params = init_params(kp, input_size, output_size)
    x = jax.random.normal(kx, (batch, input_size), jnp.float32)

    prepared = prepare_params(params)  # one-time transpose / bf16 cast / bias pack

    out = dqn_forward(x, prepared)
    out = jax.block_until_ready(out)

    ref = reference_forward(x, params)
    assert out.shape == (batch, output_size)
    # bf16 MXU matmuls (f32 accumulation) vs f32 reference -> loosened tolerance.
    assert jnp.allclose(out, ref, atol=5e-2, rtol=5e-2), (
        "mismatch vs reference, max abs err = %s"
        % float(jnp.max(jnp.abs(out - ref))))

    print("KERNEL_OK")
</pallas_src>

<mosaic_0001>
module attributes {stable_mosaic.version = 11 : i64} {
  func.func @_dqn_kernel(%arg0: i32, %arg1: memref<256x32xf32, #tpu.memory_space<vmem>>, %arg2: memref<32x512xbf16, #tpu.memory_space<vmem>>, %arg3: memref<512x64xbf16, #tpu.memory_space<vmem>>, %arg4: memref<64x16xbf16, #tpu.memory_space<vmem>>, %arg5: memref<16x8xf32, #tpu.memory_space<vmem>>, %arg6: memref<4x512xf32, #tpu.memory_space<vmem>>, %arg7: memref<256x8xf32, #tpu.memory_space<vmem>>) attributes {dimension_semantics = [#tpu.dimension_semantics<parallel>], iteration_bounds = array<i64: 2>, scalar_prefetch = 0 : i64, scratch_operands = 0 : i64, tpu.core_type = #tpu.core_type<tc>, window_params = [{transform_indices = @transform_0, window_bounds = array<i64: 256, 32>}, {pipeline_mode = #tpu.pipeline_mode<synchronous>, transform_indices = @transform_1, window_bounds = array<i64: 32, 512>}, {pipeline_mode = #tpu.pipeline_mode<synchronous>, transform_indices = @transform_2, window_bounds = array<i64: 512, 64>}, {pipeline_mode = #tpu.pipeline_mode<synchronous>, transform_indices = @transform_3, window_bounds = array<i64: 64, 16>}, {pipeline_mode = #tpu.pipeline_mode<synchronous>, transform_indices = @transform_4, window_bounds = array<i64: 16, 8>}, {pipeline_mode = #tpu.pipeline_mode<synchronous>, transform_indices = @transform_5, window_bounds = array<i64: 4, 512>}, {transform_indices = @transform_6, window_bounds = array<i64: 256, 8>}]} {
    %c0 = arith.constant 0 : index
    %c0_0 = arith.constant 0 : index
    %0 = vector.load %arg1[%c0, %c0_0] : memref<256x32xf32, #tpu.memory_space<vmem>>, vector<256x32xf32>
    %1 = arith.truncf %0 : vector<256x32xf32> to vector<256x32xbf16>
    %c0_1 = arith.constant 0 : index
    %c0_2 = arith.constant 0 : index
    %2 = vector.load %arg2[%c0_1, %c0_2] : memref<32x512xbf16, #tpu.memory_space<vmem>>, vector<32x512xbf16>
    %cst = arith.constant dense<0.000000e+00> : vector<256x512xf32>
    %3 = tpu.matmul %1, %2, %cst {dimension_numbers = #tpu.dot_dimension_numbers<[1], [0], [0], [1], [0, 0, 1, 1], [], []>} : vector<256x32xbf16>, vector<32x512xbf16>, vector<256x512xf32> -> vector<256x512xf32>
    %c0_3 = arith.constant 0 : index
    %c0_4 = arith.constant 0 : index
    %4 = vector.load %arg6[%c0_3, %c0_4] : memref<4x512xf32, #tpu.memory_space<vmem>>, vector<1x512xf32>
    %5 = arith.truncf %4 : vector<1x512xf32> to vector<1x512xbf16>
    %6 = arith.truncf %3 : vector<256x512xf32> to vector<256x512xbf16>
    %7 = vector.broadcast %5 : vector<1x512xbf16> to vector<256x512xbf16>
    %8 = arith.addf %6, %7 : vector<256x512xbf16>
    %cst_5 = arith.constant 0.000000e+00 : bf16
    %9 = vector.broadcast %cst_5 : bf16 to vector<256x512xbf16>
    %10 = arith.maximumf %8, %9 : vector<256x512xbf16>
    %c0_6 = arith.constant 0 : index
    %c0_7 = arith.constant 0 : index
    %11 = vector.load %arg3[%c0_6, %c0_7] : memref<512x64xbf16, #tpu.memory_space<vmem>>, vector<512x64xbf16>
    %cst_8 = arith.constant dense<0.000000e+00> : vector<256x64xf32>
    %12 = tpu.matmul %10, %11, %cst_8 {dimension_numbers = #tpu.dot_dimension_numbers<[1], [0], [0], [1], [0, 0, 1, 1], [], []>} : vector<256x512xbf16>, vector<512x64xbf16>, vector<256x64xf32> -> vector<256x64xf32>
    %c1 = arith.constant 1 : index
    %c0_9 = arith.constant 0 : index
    %13 = vector.load %arg6[%c1, %c0_9] : memref<4x512xf32, #tpu.memory_space<vmem>>, vector<1x64xf32>
    %14 = vector.broadcast %13 : vector<1x64xf32> to vector<256x64xf32>
    %15 = arith.addf %12, %14 : vector<256x64xf32>
    %cst_10 = arith.constant 0.000000e+00 : f32
    %16 = vector.broadcast %cst_10 : f32 to vector<256x64xf32>
    %17 = arith.maximumf %15, %16 : vector<256x64xf32>
    %18 = arith.truncf %17 : vector<256x64xf32> to vector<256x64xbf16>
    %c0_11 = arith.constant 0 : index
    %c0_12 = arith.constant 0 : index
    %19 = vector.load %arg4[%c0_11, %c0_12] : memref<64x16xbf16, #tpu.memory_space<vmem>>, vector<64x16xbf16>
    %cst_13 = arith.constant dense<0.000000e+00> : vector<256x16xf32>
    %20 = tpu.matmul %18, %19, %cst_13 {dimension_numbers = #tpu.dot_dimension_numbers<[1], [0], [0], [1], [0, 0, 1, 1], [], []>} : vector<256x64xbf16>, vector<64x16xbf16>, vector<256x16xf32> -> vector<256x16xf32>
    %c2 = arith.constant 2 : index
    %c0_14 = arith.constant 0 : index
    %21 = vector.load %arg6[%c2, %c0_14] : memref<4x512xf32, #tpu.memory_space<vmem>>, vector<1x16xf32>
    %22 = vector.broadcast %21 : vector<1x16xf32> to vector<256x16xf32>
    %23 = arith.addf %20, %22 : vector<256x16xf32>
    %cst_15 = arith.constant 0.000000e+00 : f32
    %24 = vector.broadcast %cst_15 : f32 to vector<256x16xf32>
    %25 = arith.maximumf %23, %24 : vector<256x16xf32>
    %c0_16 = arith.constant 0 : index
    %c0_17 = arith.constant 0 : index
    %26 = vector.load %arg5[%c0_16, %c0_17] : memref<16x8xf32, #tpu.memory_space<vmem>>, vector<16x8xf32>
    %cst_18 = arith.constant dense<0.000000e+00> : vector<256x8xf32>
    %27 = tpu.matmul %25, %26, %cst_18 {dimension_numbers = #tpu.dot_dimension_numbers<[1], [0], [0], [1], [0, 0, 1, 1], [], []>} : vector<256x16xf32>, vector<16x8xf32>, vector<256x8xf32> -> vector<256x8xf32>
    %c3 = arith.constant 3 : index
    %c0_19 = arith.constant 0 : index
    %28 = vector.load %arg6[%c3, %c0_19] : memref<4x512xf32, #tpu.memory_space<vmem>>, vector<1x8xf32>
    %29 = vector.broadcast %28 : vector<1x8xf32> to vector<256x8xf32>
    %30 = arith.addf %27, %29 : vector<256x8xf32>
    %c0_20 = arith.constant 0 : index
    %c0_21 = arith.constant 0 : index
    %31 = vector.load %arg7[%c0_20, %c0_21] : memref<256x8xf32, #tpu.memory_space<vmem>>, vector<256x8xf32>
    tpu.vector_store %arg7[%c0_20, %c0_21], %30 {strides = array<i32>} : memref<256x8xf32, #tpu.memory_space<vmem>>, vector<256x8xf32>,
    return
  }
  func.func @transform_0(%arg0: i32) -> (i32, i32) {
    %c0_i32 = arith.constant 0 : i32
    %c0_i32_0 = arith.constant 0 : i32
    return %arg0, %c0_i32 : i32, i32
  }
  func.func @transform_1(%arg0: i32) -> (i32, i32) {
    %c0_i32 = arith.constant 0 : i32
    %c0_i32_0 = arith.constant 0 : i32
    %c0_i32_1 = arith.constant 0 : i32
    return %c0_i32, %c0_i32_0 : i32, i32
  }
  func.func @transform_2(%arg0: i32) -> (i32, i32) {
    %c0_i32 = arith.constant 0 : i32
    %c0_i32_0 = arith.constant 0 : i32
    %c0_i32_1 = arith.constant 0 : i32
    return %c0_i32, %c0_i32_0 : i32, i32
  }
  func.func @transform_3(%arg0: i32) -> (i32, i32) {
    %c0_i32 = arith.constant 0 : i32
    %c0_i32_0 = arith.constant 0 : i32
    %c0_i32_1 = arith.constant 0 : i32
    return %c0_i32, %c0_i32_0 : i32, i32
  }
  func.func @transform_4(%arg0: i32) -> (i32, i32) {
    %c0_i32 = arith.constant 0 : i32
    %c0_i32_0 = arith.constant 0 : i32
    %c0_i32_1 = arith.constant 0 : i32
    return %c0_i32, %c0_i32_0 : i32, i32
  }
  func.func @transform_5(%arg0: i32) -> (i32, i32) {
    %c0_i32 = arith.constant 0 : i32
    %c0_i32_0 = arith.constant 0 : i32
    %c0_i32_1 = arith.constant 0 : i32
    return %c0_i32, %c0_i32_0 : i32, i32
  }
  func.func @transform_6(%arg0: i32) -> (i32, i32) {
    %c0_i32 = arith.constant 0 : i32
    %c0_i32_0 = arith.constant 0 : i32
    return %arg0, %c0_i32 : i32, i32
  }
}

</mosaic_0001>

<llo_original>
// kernel: dqn_forward.1
$region0: #{dqn_forward.1}
  #allocation0 [shape = 'u32[]', space=smem, size = 0x4, offset = 0x4, fixed_abs, tag = 'smem constant byte address 0x4 - core index']
  #allocation1 [shape = 'u32[144,128]{1,0:T(1,128)}', space=vmem, size = 0x12000, scoped, tag = 'internal scratch']
  %s0 = inlined_call_operand.vmem [shape: f32[512,32], index: 0, kind: input, shape index: {}]
  %s1 = inlined_call_operand.vmem [shape: bf16[32,512], index: 1, kind: input, shape index: {}]
  %s2 = inlined_call_operand.vmem [shape: bf16[512,64], index: 2, kind: input, shape index: {}]
  %s3 = inlined_call_operand.vmem [shape: bf16[64,16], index: 3, kind: input, shape index: {}]
  %s4 = inlined_call_operand.vmem [shape: f32[16,8], index: 4, kind: input, shape index: {}]
  %s5 = inlined_call_operand.vmem [shape: f32[4,512], index: 5, kind: input, shape index: {}]
  %s6 = inlined_call_operand.vmem [shape: f32[512,8], index: 6, kind: output, shape index: {}]
  %s7 = sld [smem:[#allocation0]]
  $region57: #{dqn_forward.1} parent=0
    _
  %s9 = ssub.s32 1, %s7
  %s10 = scalar_select 0, %s9, %s7
  loop: start=0, step=1, limit=4
  $region2: #{dqn_forward.1} parent=0 // loop_pre_header
    _
  $region3: #{dqn_forward.1} parent=0 // loop_header
    %s12 = sphi 0, %s16
    %p13 = scmp.ge.s32.totalorder %s12, 4
    %s22 = sphi 0, %s24
    %s25 = sphi 0, %s22
    %s26 = sphi 0, %s25
    %s42 = sphi 0, %s26
    %s46 = sphi 0, %s46
    %s48 = sphi 0, %s46
    %s49 = sphi 0, %s48
    %s63 = sphi 0, %s49
    %s67 = sphi 0, %s67
    %s69 = sphi 0, %s67
    %s70 = sphi 0, %s69
    %s84 = sphi 0, %s70
    %s88 = sphi 0, %s88
    %s90 = sphi 0, %s88
    %s91 = sphi 0, %s90
    %s105 = sphi 0, %s91
    %s109 = sphi 0, %s109
    %s111 = sphi 0, %s109
    %s112 = sphi 0, %s111
    %s126 = sphi 0, %s112
    %s130 = sphi 0, %s130
    %s132 = sphi 0, %s130
    %s133 = sphi 0, %s132
    %s147 = sphi 0, %s133
    %s153 = sphi 0, %s155
    %s156 = sphi 0, %s153
    %s157 = sphi 0, %s156
    %s173 = sphi 0, %s157
  $region4: #{dqn_forward.1} parent=0 // loop_header_branch
    %15 = sbr.rel (%p13) target = $region8
  $region5: #{dqn_forward.1} parent=0 // loop_body
    %s17 = ssub.s32 %s12, 1
    %s18 = ssub.s32 %s12, 2
    %s19 = sadd.s32 %s12, 1
    %s20 = ssub.s32 %s12, %s19
    %p21 = scmp.eq.s32.totalorder %s20, 0
    %s23 = sadd.s32 %s22, 1
    %s24 = scalar_select %p21, %s22, %s23
    %p27 = pneg %p21
    %p28 = scmp.eq.s32.totalorder %s12, 1
    %p29 = por %p27, %p28
    %p30 = scmp.ne.s32.totalorder %s22, %s25
    %p31 = scmp.eq.s32.totalorder %s12, 0
    %p32 = por %p30, %p31
    %p33 = scmp.ne.s32.totalorder %s22, %s25
    %p34 = scmp.eq.s32.totalorder %s17, 1
    %p35 = por %p33, %p34
    %p36 = scmp.ne.s32.totalorder %s25, %s26
    %p37 = scmp.eq.s32.totalorder %s17, 0
    %p38 = por %p36, %p37
    %p39 = scmp.ne.s32.totalorder %s25, %s26
    %p40 = scmp.eq.s32.totalorder %s18, 1
    %p41 = por %p39, %p40
    %p43 = scmp.ne.s32.totalorder %s26, %s42
    %p44 = scmp.eq.s32.totalorder %s18, 0
    %p45 = por %p43, %p44
    %s47 = sadd.s32 %s46, 1
    %p50 = scmp.eq.s32.totalorder %s12, 1
    %p51 = scmp.ne.s32.totalorder %s46, %s48
    %p52 = scmp.eq.s32.totalorder %s12, 0
    %p53 = por %p51, %p52
    %p54 = scmp.ne.s32.totalorder %s46, %s48
    %p55 = scmp.eq.s32.totalorder %s17, 1
    %p56 = por %p54, %p55
    %p57 = scmp.ne.s32.totalorder %s48, %s49
    %p58 = scmp.eq.s32.totalorder %s17, 0
    %p59 = por %p57, %p58
    %p60 = scmp.ne.s32.totalorder %s48, %s49
    %p61 = scmp.eq.s32.totalorder %s18, 1
    %p62 = por %p60, %p61
    %p64 = scmp.ne.s32.totalorder %s49, %s63
    %p65 = scmp.eq.s32.totalorder %s18, 0
    %p66 = por %p64, %p65
    %s68 = sadd.s32 %s67, 1
    %p71 = scmp.eq.s32.totalorder %s12, 1
    %p72 = scmp.ne.s32.totalorder %s67, %s69
    %p73 = scmp.eq.s32.totalorder %s12, 0
    %p74 = por %p72, %p73
    %p75 = scmp.ne.s32.totalorder %s67, %s69
    %p76 = scmp.eq.s32.totalorder %s17, 1
    %p77 = por %p75, %p76
    %p78 = scmp.ne.s32.totalorder %s69, %s70
    %p79 = scmp.eq.s32.totalorder %s17, 0
    %p80 = por %p78, %p79
    %p81 = scmp.ne.s32.totalorder %s69, %s70
    %p82 = scmp.eq.s32.totalorder %s18, 1
    %p83 = por %p81, %p82
    %p85 = scmp.ne.s32.totalorder %s70, %s84
    %p86 = scmp.eq.s32.totalorder %s18, 0
    %p87 = por %p85, %p86
    %s89 = sadd.s32 %s88, 1
    %p92 = scmp.eq.s32.totalorder %s12, 1
    %p93 = scmp.ne.s32.totalorder %s88, %s90
    %p94 = scmp.eq.s32.totalorder %s12, 0
    %p95 = por %p93, %p94
    %p96 = scmp.ne.s32.totalorder %s88, %s90
    %p97 = scmp.eq.s32.totalorder %s17, 1
    %p98 = por %p96, %p97
    %p99 = scmp.ne.s32.totalorder %s90, %s91
    %p100 = scmp.eq.s32.totalorder %s17, 0
    %p101 = por %p99, %p100
    %p102 = scmp.ne.s32.totalorder %s90, %s91
    %p103 = scmp.eq.s32.totalorder %s18, 1
    %p104 = por %p102, %p103
    %p106 = scmp.ne.s32.totalorder %s91, %s105
    %p107 = scmp.eq.s32.totalorder %s18, 0
    %p108 = por %p106, %p107
    %s110 = sadd.s32 %s109, 1
    %p113 = scmp.eq.s32.totalorder %s12, 1
    %p114 = scmp.ne.s32.totalorder %s109, %s111
    %p115 = scmp.eq.s32.totalorder %s12, 0
    %p116 = por %p114, %p115
    %p117 = scmp.ne.s32.totalorder %s109, %s111
    %p118 = scmp.eq.s32.totalorder %s17, 1
    %p119 = por %p117, %p118
    %p120 = scmp.ne.s32.totalorder %s111, %s112
    %p121 = scmp.eq.s32.totalorder %s17, 0
    %p122 = por %p120, %p121
    %p123 = scmp.ne.s32.totalorder %s111, %s112
    %p124 = scmp.eq.s32.totalorder %s18, 1
    %p125 = por %p123, %p124
    %p127 = scmp.ne.s32.totalorder %s112, %s126
    %p128 = scmp.eq.s32.totalorder %s18, 0
    %p129 = por %p127, %p128
    %s131 = sadd.s32 %s130, 1
    %p134 = scmp.eq.s32.totalorder %s12, 1
    %p135 = scmp.ne.s32.totalorder %s130, %s132
    %p136 = scmp.eq.s32.totalorder %s12, 0
    %p137 = por %p135, %p136
    %p138 = scmp.ne.s32.totalorder %s130, %s132
    %p139 = scmp.eq.s32.totalorder %s17, 1
    %p140 = por %p138, %p139
    %p141 = scmp.ne.s32.totalorder %s132, %s133
    %p142 = scmp.eq.s32.totalorder %s17, 0
    %p143 = por %p141, %p142
    %p144 = scmp.ne.s32.totalorder %s132, %s133
    %p145 = scmp.eq.s32.totalorder %s18, 1
    %p146 = por %p144, %p145
    %p148 = scmp.ne.s32.totalorder %s133, %s147
    %p149 = scmp.eq.s32.totalorder %s18, 0
    %p150 = por %p148, %p149
    %s151 = ssub.s32 %s12, %s19
    %p152 = scmp.eq.s32.totalorder %s151, 0
    %s154 = sadd.s32 %s153, 1
    %s155 = scalar_select %p152, %s153, %s154
    %p158 = pneg %p152
    %p159 = scmp.eq.s32.totalorder %s12, 1
    %p160 = por %p158, %p159
    %p161 = scmp.ne.s32.totalorder %s153, %s156
    %p162 = scmp.eq.s32.totalorder %s12, 0
    %p163 = por %p161, %p162
    %p164 = scmp.ne.s32.totalorder %s153, %s156
    %p165 = scmp.eq.s32.totalorder %s17, 1
    %p166 = por %p164, %p165
    %p167 = scmp.ne.s32.totalorder %s156, %s157
    %p168 = scmp.eq.s32.totalorder %s17, 0
    %p169 = por %p167, %p168
    %p170 = scmp.ne.s32.totalorder %s156, %s157
    %p171 = scmp.eq.s32.totalorder %s18, 1
    %p172 = por %p170, %p171
    %p174 = scmp.ne.s32.totalorder %s157, %s173
    %p175 = scmp.eq.s32.totalorder %s18, 0
    %p176 = por %p174, %p175
    %p177 = scmp.le.s32.totalorder 1, %s12
    %p178 = scmp.lt.s32.totalorder %s12, 3
    %p179 = pnand %p177, %p178
    %p180 = pneg %p179
    // Predicated region
    $region9: #{dqn_forward.1} parent=5 // pred_check
      _
    $region10: #{dqn_forward.1} parent=5 // pred_check_branch
      %182 = sbr.rel (%p179) target = $region12
    $region11: #{dqn_forward.1} parent=5 // pred_region
      %s183 = ssub.s32 %s12, 1
      // Predicated region
      $region13: #{dqn_forward.1} parent=11 // pred_check
        %p184 = pneg %p59
      $region14: #{dqn_forward.1} parent=11 // pred_check_branch
        %186 = sbr.rel (%p184) target = $region16
      $region15: #{dqn_forward.1} parent=11 // pred_region
        _
      $region16: #{dqn_forward.1} parent=11 // pred_fallthru
        _
      // Predicated region
      $region17: #{dqn_forward.1} parent=11 // pred_check
        %p187 = pneg %p80
      $region18: #{dqn_forward.1} parent=11 // pred_check_branch
        %189 = sbr.rel (%p187) target = $region20
      $region19: #{dqn_forward.1} parent=11 // pred_region
        _
      $region20: #{dqn_forward.1} parent=11 // pred_fallthru
        _
      // Predicated region
      $region21: #{dqn_forward.1} parent=11 // pred_check
        %p190 = pneg %p101
      $region22: #{dqn_forward.1} parent=11 // pred_check_branch
        %192 = sbr.rel (%p190) target = $region24
      $region23: #{dqn_forward.1} parent=11 // pred_region
        _
      $region24: #{dqn_forward.1} parent=11 // pred_fallthru
        _
      // Predicated region
      $region25: #{dqn_forward.1} parent=11 // pred_check
        %p193 = pneg %p122
      $region26: #{dqn_forward.1} parent=11 // pred_check_branch
        %195 = sbr.rel (%p193) target = $region28
      $region27: #{dqn_forward.1} parent=11 // pred_region
        _
      $region28: #{dqn_forward.1} parent=11 // pred_fallthru
        _
      // Predicated region
      $region29: #{dqn_forward.1} parent=11 // pred_check
        %p196 = pneg %p143
      $region30: #{dqn_forward.1} parent=11 // pred_check_branch
        %198 = sbr.rel (%p196) target = $region32
      $region31: #{dqn_forward.1} parent=11 // pred_region
        _
      $region32: #{dqn_forward.1} parent=11 // pred_fallthru
        _
    $region12: #{dqn_forward.1} parent=5 // pred_fallthru
      _
    %p199 = scmp.lt.s32.totalorder %s12, 2
    // Predicated region
    $region33: #{dqn_forward.1} parent=5 // pred_check
      %p200 = pneg %p199
    $region34: #{dqn_forward.1} parent=5 // pred_check_branch
      %202 = sbr.rel (%p200) target = $region36
    $region35: #{dqn_forward.1} parent=5 // pred_region
      // Predicated region
      $region37: #{dqn_forward.1} parent=35 // pred_check
        %p203 = pneg %p32
      $region38: #{dqn_forward.1} parent=35 // pred_check_branch
        %205 = sbr.rel (%p203) target = $region40
      $region39: #{dqn_forward.1} parent=35 // pred_region
        %s206 = smul.u32 32, %s12
        %p207 = scmp.lt.s32.totalorder %s206, 63
        %s208 = scalar_select %p207, %s206, 63
        %s209 = smul.addr %s208, 8
        %s210 = scalar_lea.vmem %s0, %s209
        %s211 = smul.u32 32, %s12
      $region40: #{dqn_forward.1} parent=35 // pred_fallthru
        _
    $region36: #{dqn_forward.1} parent=5 // pred_fallthru
      _
    %p212 = scmp.le.s32.totalorder 1, %s12
    %p213 = scmp.lt.s32.totalorder %s12, 3
    %p214 = pnand %p212, %p213
    %p215 = pneg %p214
    // Predicated region
    $region41: #{dqn_forward.1} parent=5 // pred_check
      _
    $region42: #{dqn_forward.1} parent=5 // pred_check_branch
      %217 = sbr.rel (%p214) target = $region44
    $region43: #{dqn_forward.1} parent=5 // pred_region
      %s218 = ssub.s32 %s12, 1
      %s219 = smul.u32 32, %s17
      %p220 = scmp.lt.s32.totalorder %s219, 63
      %s221 = scalar_select %p220, %s219, 63
      %s222 = smul.addr %s221, 8
      %s223 = scalar_lea.vmem %s0, %s222
      %p224 = pneg %p38
      %p225 = pneg %p35
      %p226 = pneg %p59
      %p227 = pneg %p56
      %p228 = pneg %p80
      %p229 = pneg %p77
      %p230 = pneg %p101
      %p231 = pneg %p98
      %p232 = pneg %p122
      %p233 = pneg %p119
      %p234 = pneg %p143
      %p235 = pneg %p140
      %p236 = pneg %p169
      %p237 = pneg %p166
      %s238 = smul.u32 32, %s17
      %p239 = scmp.lt.s32.totalorder %s238, 63
      %s240 = scalar_select %p239, %s238, 63
      %s241 = smul.addr %s240, 8
      %s242 = scalar_lea.vmem %s6, %s241
      %s243 = smul.u32 32, %s17
      %p244 = scmp.lt.s32.totalorder %s243, 63
      %s245 = scalar_select %p244, %s243, 63
      %s246 = smul.addr %s245, 8
      %s247 = scalar_lea.vmem %s0, %s246
      %s248 = smul.u32 32, %s17
      %s249 = smul.u32 32, %s17
      %p250 = scmp.lt.s32.totalorder %s249, 63
      %s251 = scalar_select %p250, %s249, 63
      %s252 = smul.addr %s251, 8
      %s253 = scalar_lea.vmem %s6, %s252
      %s254 = smul.u32 32, %s17
      %v256 = vld [vmem:[%s247] sm:$0xff]
      %v257 = vld [vmem:[%s247 + $0x8] sm:$0xff]
      %v258 = vld [vmem:[%s247 + $0x10] sm:$0xff]
      %v259 = vld [vmem:[%s247 + $0x18] sm:$0xff]
      %v260 = vld [vmem:[%s247 + $0x20] sm:$0xff]
      %v261 = vld [vmem:[%s247 + $0x28] sm:$0xff]
      %v262 = vld [vmem:[%s247 + $0x30] sm:$0xff]
      %v263 = vld [vmem:[%s247 + $0x38] sm:$0xff]
      %v264 = vld [vmem:[%s247 + $0x40] sm:$0xff]
      %v265 = vld [vmem:[%s247 + $0x48] sm:$0xff]
      %v266 = vld [vmem:[%s247 + $0x50] sm:$0xff]
      %v267 = vld [vmem:[%s247 + $0x58] sm:$0xff]
      %v268 = vld [vmem:[%s247 + $0x60] sm:$0xff]
      %v269 = vld [vmem:[%s247 + $0x68] sm:$0xff]
      %v270 = vld [vmem:[%s247 + $0x70] sm:$0xff]
      %v271 = vld [vmem:[%s247 + $0x78] sm:$0xff]
      %v272 = vld [vmem:[%s247 + $0x80] sm:$0xff]
      %v273 = vld [vmem:[%s247 + $0x88] sm:$0xff]
      %v274 = vld [vmem:[%s247 + $0x90] sm:$0xff]
      %v275 = vld [vmem:[%s247 + $0x98] sm:$0xff]
      %v276 = vld [vmem:[%s247 + $0xa0] sm:$0xff]
      %v277 = vld [vmem:[%s247 + $0xa8] sm:$0xff]
      %v278 = vld [vmem:[%s247 + $0xb0] sm:$0xff]
      %v279 = vld [vmem:[%s247 + $0xb8] sm:$0xff]
      %v280 = vld [vmem:[%s247 + $0xc0] sm:$0xff]
      %v281 = vld [vmem:[%s247 + $0xc8] sm:$0xff]
      %v282 = vld [vmem:[%s247 + $0xd0] sm:$0xff]
      %v283 = vld [vmem:[%s247 + $0xd8] sm:$0xff]
      %v284 = vld [vmem:[%s247 + $0xe0] sm:$0xff]
      %v285 = vld [vmem:[%s247 + $0xe8] sm:$0xff]
      %v286 = vld [vmem:[%s247 + $0xf0] sm:$0xff]
      %v287 = vld [vmem:[%s247 + $0xf8] sm:$0xff]
      %v288 = vpack.c.bf16 %v257, %v256
      %v289 = vpack.c.bf16 %v259, %v258
      %v290 = vpack.c.bf16 %v261, %v260
      %v291 = vpack.c.bf16 %v263, %v262
      %v292 = vpack.c.bf16 %v265, %v264
      %v293 = vpack.c.bf16 %v267, %v266
      %v294 = vpack.c.bf16 %v269, %v268
      %v295 = vpack.c.bf16 %v271, %v270
      %v296 = vpack.c.bf16 %v273, %v272
      %v297 = vpack.c.bf16 %v275, %v274
      %v298 = vpack.c.bf16 %v277, %v276
      %v299 = vpack.c.bf16 %v279, %v278
      %v300 = vpack.c.bf16 %v281, %v280
      %v301 = vpack.c.bf16 %v283, %v282
      %v302 = vpack.c.bf16 %v285, %v284
      %v303 = vpack.c.bf16 %v287, %v286
      %v304 = vld [vmem:[%s1] sm:$0xff]
      %v305 = vld [vmem:[%s1 + $0x8] sm:$0xff]
      %v306 = vld [vmem:[%s1 + $0x10] sm:$0xff]
      %v307 = vld [vmem:[%s1 + $0x18] sm:$0xff]
      %v308 = vld [vmem:[%s1 + $0x20] sm:$0xff]
      %v309 = vld [vmem:[%s1 + $0x28] sm:$0xff]
      %v310 = vld [vmem:[%s1 + $0x30] sm:$0xff]
      %v311 = vld [vmem:[%s1 + $0x38] sm:$0xff]
      %v320 = vunpack.c.l.b16 %v304
      %v321 = vunpack.c.h.b16 %v304
      %v322 = vunpack.c.l.b16 %v305
      %v323 = vunpack.c.h.b16 %v305
      %v324 = vunpack.c.l.b16 %v306
      %v325 = vunpack.c.h.b16 %v306
      %v326 = vunpack.c.l.b16 %v307
      %v327 = vunpack.c.h.b16 %v307
      %v328 = vunpack.c.l.b16 %v308
      %v329 = vunpack.c.h.b16 %v308
      %v330 = vunpack.c.l.b16 %v309
      %v331 = vunpack.c.h.b16 %v309
      %v332 = vunpack.c.l.b16 %v310
      %v333 = vunpack.c.h.b16 %v310
      %v334 = vunpack.c.l.b16 %v311
      %v335 = vunpack.c.h.b16 %v311
      %v336 = vpack.c.b16 %v324, %v320
      %v337 = vpack.c.b16 %v325, %v321
      %v338 = vpack.c.b16 %v326, %v322
      %v339 = vpack.c.b16 %v327, %v323
      %v340 = vpack.c.b16 %v332, %v328
      %v341 = vpack.c.b16 %v333, %v329
      %v342 = vpack.c.b16 %v334, %v330
      %v343 = vpack.c.b16 %v335, %v331
      %vm352 = vcmask 261120
      %v354 = vsel %vm352, %v288, 0
      %v357 = vsel %vm352, %v289, 0
      %v360 = vsel %vm352, %v290, 0
      %v363 = vsel %vm352, %v291, 0
      %v366 = vsel %vm352, %v292, 0
      %v369 = vsel %vm352, %v293, 0
      %v372 = vsel %vm352, %v294, 0
      %v375 = vsel %vm352, %v295, 0
      %v378 = vsel %vm352, %v296, 0
      %v381 = vsel %vm352, %v297, 0
      %v384 = vsel %vm352, %v298, 0
      %v387 = vsel %vm352, %v299, 0
      %v390 = vsel %vm352, %v300, 0
      %v393 = vsel %vm352, %v301, 0
      %v396 = vsel %vm352, %v302, 0
      %v399 = vsel %vm352, %v303, 0
      %401 = vmatprep.subr.bf16.mxu0 %v337
      %402 = vmatpush1.bf16.msra.mxu0 %v336
      %403 = vmatprep.subr.bf16.mxu0 %v341
      %404 = vmatpush1.bf16.msra.mxu0 %v340
      %405 = vmatprep.subr.bf16.mxu0 0
      %406 = vmatpush1.bf16.msra.mxu0 0
      %407 = vmatprep.subr.bf16.mxu0 0
      %408 = vmatpush1.bf16.msra.mxu0 0
      %409 = vmatprep.subr.bf16.mxu0 0
      %410 = vmatpush1.bf16.msra.mxu0 0
      %411 = vmatprep.subr.bf16.mxu0 0
      %412 = vmatpush1.bf16.msra.mxu0 0
      %413 = vmatprep.subr.bf16.mxu0 0
      %414 = vmatpush1.bf16.msra.mxu0 0
      %415 = vmatprep.subr.bf16.mxu0 0
      %416 = vmatpush1.bf16.msra.mxu0 0
      %417 = vmatprep.subr.bf16.mxu0 0
      %418 = vmatpush1.bf16.msra.mxu0 0
      %419 = vmatprep.subr.bf16.mxu0 0
      %420 = vmatpush1.bf16.msra.mxu0 0
      %421 = vmatprep.subr.bf16.mxu0 0
      %422 = vmatpush1.bf16.msra.mxu0 0
      %423 = vmatprep.subr.bf16.mxu0 0
      %424 = vmatpush1.bf16.msra.mxu0 0
      %425 = vmatprep.subr.bf16.mxu0 0
      %426 = vmatpush1.bf16.msra.mxu0 0
      %427 = vmatprep.subr.bf16.mxu0 0
      %428 = vmatpush1.bf16.msra.mxu0 0
      %429 = vmatprep.subr.bf16.mxu0 0
      %430 = vmatpush1.bf16.msra.mxu0 0
      %431 = vmatprep.subr.bf16.mxu0 0
      %432 = vmatpush1.bf16.msra.mxu0 0
      %433 = vmatprep.mubr.bf16.mxu0 0
      %434 = vmatmul.mubr.bf16.gmra.mrb[0].mxu0 %v354
      %v435 = vpop.f32.mrb[0].mxu0
      %v436 = vadd.f32 0.0, %v435
      %v437 = vpop.f32.mrb[0].mxu0
      %v438 = vadd.f32 0.0, %v437
      %v439 = vpop.f32.mrb[0].mxu0
      %v440 = vadd.f32 0.0, %v439
      %v441 = vpop.f32.mrb[0].mxu0
      %v442 = vadd.f32 0.0, %v441
      %443 = vmatprep.mubr.bf16.mxu0 0
      %444 = vmatmul.mubr.bf16.gmra.mrb[0].mxu0 %v357
      %v445 = vpop.f32.mrb[0].mxu0
      %v446 = vadd.f32 0.0, %v445
      %v447 = vpop.f32.mrb[0].mxu0
      %v448 = vadd.f32 0.0, %v447
      %v449 = vpop.f32.mrb[0].mxu0
      %v450 = vadd.f32 0.0, %v449
      %v451 = vpop.f32.mrb[0].mxu0
      %v452 = vadd.f32 0.0, %v451
      %453 = vmatprep.mubr.bf16.mxu0 0
      %454 = vmatmul.mubr.bf16.gmra.mrb[0].mxu0 %v360
      %v455 = vpop.f32.mrb[0].mxu0
      %v456 = vadd.f32 0.0, %v455
      %v457 = vpop.f32.mrb[0].mxu0
      %v458 = vadd.f32 0.0, %v457
      %v459 = vpop.f32.mrb[0].mxu0
      %v460 = vadd.f32 0.0, %v459
      %v461 = vpop.f32.mrb[0].mxu0
      %v462 = vadd.f32 0.0, %v461
      %463 = vmatprep.mubr.bf16.mxu0 0
      %464 = vmatmul.mubr.bf16.gmra.mrb[0].mxu0 %v363
      %v465 = vpop.f32.mrb[0].mxu0
      %v466 = vadd.f32 0.0, %v465
      %v467 = vpop.f32.mrb[0].mxu0
      %v468 = vadd.f32 0.0, %v467
      %v469 = vpop.f32.mrb[0].mxu0
      %v470 = vadd.f32 0.0, %v469
      %v471 = vpop.f32.mrb[0].mxu0
      %v472 = vadd.f32 0.0, %v471
      %473 = vmatprep.mubr.bf16.mxu0 0
      %474 = vmatmul.mubr.bf16.gmra.mrb[0].mxu0 %v366
      %v475 = vpop.f32.mrb[0].mxu0
      %v476 = vadd.f32 0.0, %v475
      %v477 = vpop.f32.mrb[0].mxu0
      %v478 = vadd.f32 0.0, %v477
      %v479 = vpop.f32.mrb[0].mxu0
      %v480 = vadd.f32 0.0, %v479
      %v481 = vpop.f32.mrb[0].mxu0
      %v482 = vadd.f32 0.0, %v481
      %483 = vmatprep.mubr.bf16.mxu0 0
      %484 = vmatmul.mubr.bf16.gmra.mrb[0].mxu0 %v369
      %v485 = vpop.f32.mrb[0].mxu0
      %v486 = vadd.f32 0.0, %v485
      %v487 = vpop.f32.mrb[0].mxu0
      %v488 = vadd.f32 0.0, %v487
      %v489 = vpop.f32.mrb[0].mxu0
      %v490 = vadd.f32 0.0, %v489
      %v491 = vpop.f32.mrb[0].mxu0
      %v492 = vadd.f32 0.0, %v491
      %493 = vmatprep.mubr.bf16.mxu0 0
      %494 = vmatmul.mubr.bf16.gmra.mrb[0].mxu0 %v372
      %v495 = vpop.f32.mrb[0].mxu0
      %v496 = vadd.f32 0.0, %v495
      %v497 = vpop.f32.mrb[0].mxu0
      %v498 = vadd.f32 0.0, %v497
      %v499 = vpop.f32.mrb[0].mxu0
      %v500 = vadd.f32 0.0, %v499
      %v501 = vpop.f32.mrb[0].mxu0
      %v502 = vadd.f32 0.0, %v501
      %503 = vmatprep.mubr.bf16.mxu0 0
      %504 = vmatmul.mubr.bf16.gmra.mrb[0].mxu0 %v375
      %v505 = vpop.f32.mrb[0].mxu0
      %v506 = vadd.f32 0.0, %v505
      %v507 = vpop.f32.mrb[0].mxu0
      %v508 = vadd.f32 0.0, %v507
      %v509 = vpop.f32.mrb[0].mxu0
      %v510 = vadd.f32 0.0, %v509
      %v511 = vpop.f32.mrb[0].mxu0
      %v512 = vadd.f32 0.0, %v511
      %513 = vmatprep.mubr.bf16.mxu0 0
      %514 = vmatmul.mubr.bf16.gmra.mrb[0].mxu0 %v378
      %v515 = vpop.f32.mrb[0].mxu0
      %v516 = vadd.f32 0.0, %v515
      %v517 = vpop.f32.mrb[0].mxu0
      %v518 = vadd.f32 0.0, %v517
      %v519 = vpop.f32.mrb[0].mxu0
      %v520 = vadd.f32 0.0, %v519
      %v521 = vpop.f32.mrb[0].mxu0
      %v522 = vadd.f32 0.0, %v521
      %523 = vmatprep.mubr.bf16.mxu0 0
      %524 = vmatmul.mubr.bf16.gmra.mrb[0].mxu0 %v381
      %v525 = vpop.f32.mrb[0].mxu0
      %v526 = vadd.f32 0.0, %v525
      %v527 = vpop.f32.mrb[0].mxu0
      %v528 = vadd.f32 0.0, %v527
      %v529 = vpop.f32.mrb[0].mxu0
      %v530 = vadd.f32 0.0, %v529
      %v531 = vpop.f32.mrb[0].mxu0
      %v532 = vadd.f32 0.0, %v531
      %533 = vmatprep.mubr.bf16.mxu0 0
      %534 = vmatmul.mubr.bf16.gmra.mrb[0].mxu0 %v384
      %v535 = vpop.f32.mrb[0].mxu0
      %v536 = vadd.f32 0.0, %v535
      %v537 = vpop.f32.mrb[0].mxu0
      %v538 = vadd.f32 0.0, %v537
      %v539 = vpop.f32.mrb[0].mxu0
      %v540 = vadd.f32 0.0, %v539
      %v541 = vpop.f32.mrb[0].mxu0
      %v542 = vadd.f32 0.0, %v541
      %543 = vmatprep.mubr.bf16.mxu0 0
      %544 = vmatmul.mubr.bf16.gmra.mrb[0].mxu0 %v387
      %v545 = vpop.f32.mrb[0].mxu0
      %v546 = vadd.f32 0.0, %v545
      %v547 = vpop.f32.mrb[0].mxu0
      %v548 = vadd.f32 0.0, %v547
      %v549 = vpop.f32.mrb[0].mxu0
      %v550 = vadd.f32 0.0, %v549
      %v551 = vpop.f32.mrb[0].mxu0
      %v552 = vadd.f32 0.0, %v551
      %553 = vmatprep.mubr.bf16.mxu0 0
      %554 = vmatmul.mubr.bf16.gmra.mrb[0].mxu0 %v390
      %v555 = vpop.f32.mrb[0].mxu0
      %v556 = vadd.f32 0.0, %v555
      %v557 = vpop.f32.mrb[0].mxu0
      %v558 = vadd.f32 0.0, %v557
      %v559 = vpop.f32.mrb[0].mxu0
      %v560 = vadd.f32 0.0, %v559
      %v561 = vpop.f32.mrb[0].mxu0
      %v562 = vadd.f32 0.0, %v561
      %563 = vmatprep.mubr.bf16.mxu0 0
      %564 = vmatmul.mubr.bf16.gmra.mrb[0].mxu0 %v393
      %v565 = vpop.f32.mrb[0].mxu0
      %v566 = vadd.f32 0.0, %v565
      %v567 = vpop.f32.mrb[0].mxu0
      %v568 = vadd.f32 0.0, %v567
      %v569 = vpop.f32.mrb[0].mxu0
      %v570 = vadd.f32 0.0, %v569
      %v571 = vpop.f32.mrb[0].mxu0
      %v572 = vadd.f32 0.0, %v571
      %573 = vmatprep.mubr.bf16.mxu0 0
      %574 = vmatmul.mubr.bf16.gmra.mrb[0].mxu0 %v396
      %v575 = vpop.f32.mrb[0].mxu0
      %v576 = vadd.f32 0.0, %v575
      %v577 = vpop.f32.mrb[0].mxu0
      %v578 = vadd.f32 0.0, %v577
      %v579 = vpop.f32.mrb[0].mxu0
      %v580 = vadd.f32 0.0, %v579
      %v581 = vpop.f32.mrb[0].mxu0
      %v582 = vadd.f32 0.0, %v581
      %583 = vmatprep.mubr.bf16.mxu0 0
      %584 = vmatmul.mubr.bf16.gmra.mrb[0].mxu0 %v399
      %v585 = vpop.f32.mrb[0].mxu0
      %v586 = vadd.f32 0.0, %v585
      %v587 = vpop.f32.mrb[0].mxu0
      %v588 = vadd.f32 0.0, %v587
      %v589 = vpop.f32.mrb[0].mxu0
      %v590 = vadd.f32 0.0, %v589
      %v591 = vpop.f32.mrb[0].mxu0
      %v592 = vadd.f32 0.0, %v591
      %593 = vdwg.mxu0
      %594 = vmatprep.subr.bf16.mxu0 %v339
      %595 = vmatpush1.bf16.msra.mxu0 %v338
      %596 = vmatprep.subr.bf16.mxu0 %v343
      %597 = vmatpush1.bf16.msra.mxu0 %v342
      %598 = vmatprep.subr.bf16.mxu0 0
      %599 = vmatpush1.bf16.msra.mxu0 0
      %600 = vmatprep.subr.bf16.mxu0 0
      %601 = vmatpush1.bf16.msra.mxu0 0
      %602 = vmatprep.subr.bf16.mxu0 0
      %603 = vmatpush1.bf16.msra.mxu0 0
      %604 = vmatprep.subr.bf16.mxu0 0
      %605 = vmatpush1.bf16.msra.mxu0 0
      %606 = vmatprep.subr.bf16.mxu0 0
      %607 = vmatpush1.bf16.msra.mxu0 0
      %608 = vmatprep.subr.bf16.mxu0 0
      %609 = vmatpush1.bf16.msra.mxu0 0
      %610 = vmatprep.subr.bf16.mxu0 0
      %611 = vmatpush1.bf16.msra.mxu0 0
      %612 = vmatprep.subr.bf16.mxu0 0
      %613 = vmatpush1.bf16.msra.mxu0 0
      %614 = vmatprep.subr.bf16.mxu0 0
      %615 = vmatpush1.bf16.msra.mxu0 0
      %616 = vmatprep.subr.bf16.mxu0 0
      %617 = vmatpush1.bf16.msra.mxu0 0
      %618 = vmatprep.subr.bf16.mxu0 0
      %619 = vmatpush1.bf16.msra.mxu0 0
      %620 = vmatprep.subr.bf16.mxu0 0
      %621 = vmatpush1.bf16.msra.mxu0 0
      %622 = vmatprep.subr.bf16.mxu0 0
      %623 = vmatpush1.bf16.msra.mxu0 0
      %624 = vmatprep.subr.bf16.mxu0 0
      %625 = vmatpush1.bf16.msra.mxu0 0
      %626 = vmatprep.mubr.bf16.mxu0 0
      %627 = vmatmul.mubr.bf16.gmra.mrb[0].mxu0 %v354
      %v628 = vpop.f32.mrb[0].mxu0
      %v629 = vadd.f32 0.0, %v628
      %v630 = vpop.f32.mrb[0].mxu0
      %v631 = vadd.f32 0.0, %v630
      %v632 = vpop.f32.mrb[0].mxu0
      %v633 = vadd.f32 0.0, %v632
      %v634 = vpop.f32.mrb[0].mxu0
      %v635 = vadd.f32 0.0, %v634
      %636 = vmatprep.mubr.bf16.mxu0 0
      %637 = vmatmul.mubr.bf16.gmra.mrb[0].mxu0 %v357
      %v638 = vpop.f32.mrb[0].mxu0
      %v639 = vadd.f32 0.0, %v638
      %v640 = vpop.f32.mrb[0].mxu0
      %v641 = vadd.f32 0.0, %v640
      %v642 = vpop.f32.mrb[0].mxu0
      %v643 = vadd.f32 0.0, %v642
      %v644 = vpop.f32.mrb[0].mxu0
      %v645 = vadd.f32 0.0, %v644
      %646 = vmatprep.mubr.bf16.mxu0 0
      %647 = vmatmul.mubr.bf16.gmra.mrb[0].mxu0 %v360
      %v648 = vpop.f32.mrb[0].mxu0
      %v649 = vadd.f32 0.0, %v648
      %v650 = vpop.f32.mrb[0].mxu0
      %v651 = vadd.f32 0.0, %v650
      %v652 = vpop.f32.mrb[0].mxu0
      %v653 = vadd.f32 0.0, %v652
      %v654 = vpop.f32.mrb[0].mxu0
      %v655 = vadd.f32 0.0, %v654
      %656 = vmatprep.mubr.bf16.mxu0 0
      %657 = vmatmul.mubr.bf16.gmra.mrb[0].mxu0 %v363
      %v658 = vpop.f32.mrb[0].mxu0
      %v659 = vadd.f32 0.0, %v658
      %v660 = vpop.f32.mrb[0].mxu0
      %v661 = vadd.f32 0.0, %v660
      %v662 = vpop.f32.mrb[0].mxu0
      %v663 = vadd.f32 0.0, %v662
      %v664 = vpop.f32.mrb[0].mxu0
      %v665 = vadd.f32 0.0, %v664
      %666 = vmatprep.mubr.bf16.mxu0 0
      %667 = vmatmul.mubr.bf16.gmra.mrb[0].mxu0 %v366
      %v668 = vpop.f32.mrb[0].mxu0
      %v669 = vadd.f32 0.0, %v668
      %v670 = vpop.f32.mrb[0].mxu0
      %v671 = vadd.f32 0.0, %v670
      %v672 = vpop.f32.mrb[0].mxu0
      %v673 = vadd.f32 0.0, %v672
      %v674 = vpop.f32.mrb[0].mxu0
      %v675 = vadd.f32 0.0, %v674
      %676 = vmatprep.mubr.bf16.mxu0 0
      %677 = vmatmul.mubr.bf16.gmra.mrb[0].mxu0 %v369
      %v678 = vpop.f32.mrb[0].mxu0
      %v679 = vadd.f32 0.0, %v678
      %v680 = vpop.f32.mrb[0].mxu0
      %v681 = vadd.f32 0.0, %v680
      %v682 = vpop.f32.mrb[0].mxu0
      %v683 = vadd.f32 0.0, %v682
      %v684 = vpop.f32.mrb[0].mxu0
      %v685 = vadd.f32 0.0, %v684
      %686 = vmatprep.mubr.bf16.mxu0 0
      %687 = vmatmul.mubr.bf16.gmra.mrb[0].mxu0 %v372
      %v688 = vpop.f32.mrb[0].mxu0
      %v689 = vadd.f32 0.0, %v688
      %v690 = vpop.f32.mrb[0].mxu0
      %v691 = vadd.f32 0.0, %v690
      %v692 = vpop.f32.mrb[0].mxu0
      %v693 = vadd.f32 0.0, %v692
      %v694 = vpop.f32.mrb[0].mxu0
      %v695 = vadd.f32 0.0, %v694
      %696 = vmatprep.mubr.bf16.mxu0 0
      %697 = vmatmul.mubr.bf16.gmra.mrb[0].mxu0 %v375
      %v698 = vpop.f32.mrb[0].mxu0
      %v699 = vadd.f32 0.0, %v698
      %v700 = vpop.f32.mrb[0].mxu0
      %v701 = vadd.f32 0.0, %v700
      %v702 = vpop.f32.mrb[0].mxu0
      %v703 = vadd.f32 0.0, %v702
      %v704 = vpop.f32.mrb[0].mxu0
      %v705 = vadd.f32 0.0, %v704
      %706 = vmatprep.mubr.bf16.mxu0 0
      %707 = vmatmul.mubr.bf16.gmra.mrb[0].mxu0 %v378
      %v708 = vpop.f32.mrb[0].mxu0
      %v709 = vadd.f32 0.0, %v708
      %v710 = vpop.f32.mrb[0].mxu0
      %v711 = vadd.f32 0.0, %v710
      %v712 = vpop.f32.mrb[0].mxu0
      %v713 = vadd.f32 0.0, %v712
      %v714 = vpop.f32.mrb[0].mxu0
      %v715 = vadd.f32 0.0, %v714
      %716 = vmatprep.mubr.bf16.mxu0 0
      %717 = vmatmul.mubr.bf16.gmra.mrb[0].mxu0 %v381
      %v718 = vpop.f32.mrb[0].mxu0
      %v719 = vadd.f32 0.0, %v718
      %v720 = vpop.f32.mrb[0].mxu0
      %v721 = vadd.f32 0.0, %v720
      %v722 = vpop.f32.mrb[0].mxu0
      %v723 = vadd.f32 0.0, %v722
      %v724 = vpop.f32.mrb[0].mxu0
      %v725 = vadd.f32 0.0, %v724
      %726 = vmatprep.mubr.bf16.mxu0 0
      %727 = vmatmul.mubr.bf16.gmra.mrb[0].mxu0 %v384
      %v728 = vpop.f32.mrb[0].mxu0
      %v729 = vadd.f32 0.0, %v728
      %v730 = vpop.f32.mrb[0].mxu0
      %v731 = vadd.f32 0.0, %v730
      %v732 = vpop.f32.mrb[0].mxu0
      %v733 = vadd.f32 0.0, %v732
      %v734 = vpop.f32.mrb[0].mxu0
      %v735 = vadd.f32 0.0, %v734
      %736 = vmatprep.mubr.bf16.mxu0 0
      %737 = vmatmul.mubr.bf16.gmra.mrb[0].mxu0 %v387
      %v738 = vpop.f32.mrb[0].mxu0
      %v739 = vadd.f32 0.0, %v738
      %v740 = vpop.f32.mrb[0].mxu0
      %v741 = vadd.f32 0.0, %v740
      %v742 = vpop.f32.mrb[0].mxu0
      %v743 = vadd.f32 0.0, %v742
      %v744 = vpop.f32.mrb[0].mxu0
      %v745 = vadd.f32 0.0, %v744
      %746 = vmatprep.mubr.bf16.mxu0 0
      %747 = vmatmul.mubr.bf16.gmra.mrb[0].mxu0 %v390
      %v748 = vpop.f32.mrb[0].mxu0
      %v749 = vadd.f32 0.0, %v748
      %v750 = vpop.f32.mrb[0].mxu0
      %v751 = vadd.f32 0.0, %v750
      %v752 = vpop.f32.mrb[0].mxu0
      %v753 = vadd.f32 0.0, %v752
      %v754 = vpop.f32.mrb[0].mxu0
      %v755 = vadd.f32 0.0, %v754
      %756 = vmatprep.mubr.bf16.mxu0 0
      %757 = vmatmul.mubr.bf16.gmra.mrb[0].mxu0 %v393
      %v758 = vpop.f32.mrb[0].mxu0
      %v759 = vadd.f32 0.0, %v758
      %v760 = vpop.f32.mrb[0].mxu0
      %v761 = vadd.f32 0.0, %v760
      %v762 = vpop.f32.mrb[0].mxu0
      %v763 = vadd.f32 0.0, %v762
      %v764 = vpop.f32.mrb[0].mxu0
      %v765 = vadd.f32 0.0, %v764
      %766 = vmatprep.mubr.bf16.mxu0 0
      %767 = vmatmul.mubr.bf16.gmra.mrb[0].mxu0 %v396
      %v768 = vpop.f32.mrb[0].mxu0
      %v769 = vadd.f32 0.0, %v768
      %v770 = vpop.f32.mrb[0].mxu0
      %v771 = vadd.f32 0.0, %v770
      %v772 = vpop.f32.mrb[0].mxu0
      %v773 = vadd.f32 0.0, %v772
      %v774 = vpop.f32.mrb[0].mxu0
      %v775 = vadd.f32 0.0, %v774
      %776 = vmatprep.mubr.bf16.mxu0 0
      %777 = vmatmul.mubr.bf16.gmra.mrb[0].mxu0 %v399
      %v778 = vpop.f32.mrb[0].mxu0
      %v779 = vadd.f32 0.0, %v778
      %v780 = vpop.f32.mrb[0].mxu0
      %v781 = vadd.f32 0.0, %v780
      %v782 = vpop.f32.mrb[0].mxu0
      %v783 = vadd.f32 0.0, %v782
      %v784 = vpop.f32.mrb[0].mxu0
      %v785 = vadd.f32 0.0, %v784
      %786 = vdwg.mxu0
      %v787 = vld [vmem:[%s5] ss:$4 sm:$0xf]
      %v789 = vlaneseq
      %v790 = vshrl.u32 %v789, 7
      %v791 = vsub.s32 0, %v790
      %v792 = vrot.slane %v787, %v791
      %v793 = vlaneseq
      %v794 = vshrl.u32 %v793, 7
      %v795 = vsub.s32 1, %v794
      %v796 = vrot.slane %v787, %v795
      %v797 = vlaneseq
      %v798 = vshrl.u32 %v797, 7
      %v799 = vsub.s32 2, %v798
      %v800 = vrot.slane %v787, %v799
      %v801 = vlaneseq
      %v802 = vshrl.u32 %v801, 7
      %v803 = vsub.s32 3, %v802
      %v804 = vrot.slane %v787, %v803
      %v809 = vpack.c.bf16 %v792, %v792
      %v810 = vpack.c.bf16 %v796, %v796
      %v811 = vpack.c.bf16 %v800, %v800
      %v812 = vpack.c.bf16 %v804, %v804
      %v813 = vpack.c.bf16 %v440, %v436
      %v814 = vpack.c.bf16 %v442, %v438
      %v815 = vpack.c.bf16 %v633, %v629
      %v816 = vpack.c.bf16 %v635, %v631
      %v817 = vpack.c.bf16 %v450, %v446
      %v818 = vpack.c.bf16 %v452, %v448
      %v819 = vpack.c.bf16 %v643, %v639
      %v820 = vpack.c.bf16 %v645, %v641
      %v821 = vpack.c.bf16 %v460, %v456
      %v822 = vpack.c.bf16 %v462, %v458
      %v823 = vpack.c.bf16 %v653, %v649
      %v824 = vpack.c.bf16 %v655, %v651
      %v825 = vpack.c.bf16 %v470, %v466
      %v826 = vpack.c.bf16 %v472, %v468
      %v827 = vpack.c.bf16 %v663, %v659
      %v828 = vpack.c.bf16 %v665, %v661
      %v829 = vpack.c.bf16 %v480, %v476
      %v830 = vpack.c.bf16 %v482, %v478
      %v831 = vpack.c.bf16 %v673, %v669
      %v832 = vpack.c.bf16 %v675, %v671
      %v833 = vpack.c.bf16 %v490, %v486
      %v834 = vpack.c.bf16 %v492, %v488
      %v835 = vpack.c.bf16 %v683, %v679
      %v836 = vpack.c.bf16 %v685, %v681
      %v837 = vpack.c.bf16 %v500, %v496
      %v838 = vpack.c.bf16 %v502, %v498
      %v839 = vpack.c.bf16 %v693, %v689
      %v840 = vpack.c.bf16 %v695, %v691
      %v841 = vpack.c.bf16 %v510, %v506
      %v842 = vpack.c.bf16 %v512, %v508
      %v843 = vpack.c.bf16 %v703, %v699
      %v844 = vpack.c.bf16 %v705, %v701
      %v845 = vpack.c.bf16 %v520, %v516
      %v846 = vpack.c.bf16 %v522, %v518
      %v847 = vpack.c.bf16 %v713, %v709
      %v848 = vpack.c.bf16 %v715, %v711
      %v849 = vpack.c.bf16 %v530, %v526
      %v850 = vpack.c.bf16 %v532, %v528
      %v851 = vpack.c.bf16 %v723, %v719
      %v852 = vpack.c.bf16 %v725, %v721
      %v853 = vpack.c.bf16 %v540, %v536
      %v854 = vpack.c.bf16 %v542, %v538
      %v855 = vpack.c.bf16 %v733, %v729
      %v856 = vpack.c.bf16 %v735, %v731
      %v857 = vpack.c.bf16 %v550, %v546
      %v858 = vpack.c.bf16 %v552, %v548
      %v859 = vpack.c.bf16 %v743, %v739
      %v860 = vpack.c.bf16 %v745, %v741
      %v861 = vpack.c.bf16 %v560, %v556
      %v862 = vpack.c.bf16 %v562, %v558
      %v863 = vpack.c.bf16 %v753, %v749
      %v864 = vpack.c.bf16 %v755, %v751
      %v865 = vpack.c.bf16 %v570, %v566
      %v866 = vpack.c.bf16 %v572, %v568
      %v867 = vpack.c.bf16 %v763, %v759
      %v868 = vpack.c.bf16 %v765, %v761
      %v869 = vpack.c.bf16 %v580, %v576
      %v870 = vpack.c.bf16 %v582, %v578
      %v871 = vpack.c.bf16 %v773, %v769
      %v872 = vpack.c.bf16 %v775, %v771
      %v873 = vpack.c.bf16 %v590, %v586
      %v874 = vpack.c.bf16 %v592, %v588
      %v875 = vpack.c.bf16 %v783, %v779
      %v876 = vpack.c.bf16 %v785, %v781
      %v878 = vpack.i.b16 %v809, %v809
      %v880 = vlaneseq
      %v881 = vshrl.u32 %v880, 7
      %v882 = vsub.s32 0, %v881
      %v883 = vrot.slane %v878, %v882
      %v885 = vpack.i.b16 %v810, %v810
      %v887 = vlaneseq
      %v888 = vshrl.u32 %v887, 7
      %v889 = vsub.s32 0, %v888
      %v890 = vrot.slane %v885, %v889
      %v892 = vpack.i.b16 %v811, %v811
      %v894 = vlaneseq
      %v895 = vshrl.u32 %v894, 7
      %v896 = vsub.s32 0, %v895
      %v897 = vrot.slane %v892, %v896
      %v899 = vpack.i.b16 %v812, %v812
      %v901 = vlaneseq
      %v902 = vshrl.u32 %v901, 7
      %v903 = vsub.s32 0, %v902
      %v904 = vrot.slane %v899, %v903
      %v905 = vadd.bf16 %v813, %v883
      %v906 = vadd.bf16 %v814, %v890
      %v907 = vadd.bf16 %v815, %v897
      %v908 = vadd.bf16 %v816, %v904
      %v909 = vadd.bf16 %v817, %v883
      %v910 = vadd.bf16 %v818, %v890
      %v911 = vadd.bf16 %v819, %v897
      %v912 = vadd.bf16 %v820, %v904
      %v913 = vadd.bf16 %v821, %v883
      %v914 = vadd.bf16 %v822, %v890
      %v915 = vadd.bf16 %v823, %v897
      %v916 = vadd.bf16 %v824, %v904
      %v917 = vadd.bf16 %v825, %v883
      %v918 = vadd.bf16 %v826, %v890
      %v919 = vadd.bf16 %v827, %v897
      %v920 = vadd.bf16 %v828, %v904
      %v921 = vadd.bf16 %v829, %v883
      %v922 = vadd.bf16 %v830, %v890
      %v923 = vadd.bf16 %v831, %v897
      %v924 = vadd.bf16 %v832, %v904
      %v925 = vadd.bf16 %v833, %v883
      %v926 = vadd.bf16 %v834, %v890
      %v927 = vadd.bf16 %v835, %v897
      %v928 = vadd.bf16 %v836, %v904
      %v929 = vadd.bf16 %v837, %v883
      %v930 = vadd.bf16 %v838, %v890
      %v931 = vadd.bf16 %v839, %v897
      %v932 = vadd.bf16 %v840, %v904
      %v933 = vadd.bf16 %v841, %v883
      %v934 = vadd.bf16 %v842, %v890
      %v935 = vadd.bf16 %v843, %v897
      %v936 = vadd.bf16 %v844, %v904
      %v937 = vadd.bf16 %v845, %v883
      %v938 = vadd.bf16 %v846, %v890
      %v939 = vadd.bf16 %v847, %v897
      %v940 = vadd.bf16 %v848, %v904
      %v941 = vadd.bf16 %v849, %v883
      %v942 = vadd.bf16 %v850, %v890
      %v943 = vadd.bf16 %v851, %v897
      %v944 = vadd.bf16 %v852, %v904
      %v945 = vadd.bf16 %v853, %v883
      %v946 = vadd.bf16 %v854, %v890
      %v947 = vadd.bf16 %v855, %v897
      %v948 = vadd.bf16 %v856, %v904
      %v949 = vadd.bf16 %v857, %v883
      %v950 = vadd.bf16 %v858, %v890
      %v951 = vadd.bf16 %v859, %v897
      %v952 = vadd.bf16 %v860, %v904
      %v953 = vadd.bf16 %v861, %v883
      %v954 = vadd.bf16 %v862, %v890
      %v955 = vadd.bf16 %v863, %v897
      %v956 = vadd.bf16 %v864, %v904
      %v957 = vadd.bf16 %v865, %v883
      %v958 = vadd.bf16 %v866, %v890
      %v959 = vadd.bf16 %v867, %v897
      %v960 = vadd.bf16 %v868, %v904
      %v961 = vadd.bf16 %v869, %v883
      %v962 = vadd.bf16 %v870, %v890
      %v963 = vadd.bf16 %v871, %v897
      %v964 = vadd.bf16 %v872, %v904
      %v965 = vadd.bf16 %v873, %v883
      %v966 = vadd.bf16 %v874, %v890
      %v967 = vadd.bf16 %v875, %v897
      %v968 = vadd.bf16 %v876, %v904
      %v969 = vmax.bf16 %v905, 0
      %v970 = vmax.bf16 %v906, 0
      %v971 = vmax.bf16 %v907, 0
      %v972 = vmax.bf16 %v908, 0
      %v973 = vmax.bf16 %v909, 0
      %v974 = vmax.bf16 %v910, 0
      %v975 = vmax.bf16 %v911, 0
      %v976 = vmax.bf16 %v912, 0
      %v977 = vmax.bf16 %v913, 0
      %v978 = vmax.bf16 %v914, 0
      %v979 = vmax.bf16 %v915, 0
      %v980 = vmax.bf16 %v916, 0
      %v981 = vmax.bf16 %v917, 0
      %v982 = vmax.bf16 %v918, 0
      %v983 = vmax.bf16 %v919, 0
      %v984 = vmax.bf16 %v920, 0
      %v985 = vmax.bf16 %v921, 0
      %v986 = vmax.bf16 %v922, 0
      %v987 = vmax.bf16 %v923, 0
      %v988 = vmax.bf16 %v924, 0
      %v989 = vmax.bf16 %v925, 0
      %v990 = vmax.bf16 %v926, 0
      %v991 = vmax.bf16 %v927, 0
      %v992 = vmax.bf16 %v928, 0
      %v993 = vmax.bf16 %v929, 0
      %v994 = vmax.bf16 %v930, 0
      %v995 = vmax.bf16 %v931, 0
      %v996 = vmax.bf16 %v932, 0
      %v997 = vmax.bf16 %v933, 0
      %v998 = vmax.bf16 %v934, 0
      %v999 = vmax.bf16 %v935, 0
      %v1000 = vmax.bf16 %v936, 0
      %v1001 = vmax.bf16 %v937, 0
      %v1002 = vmax.bf16 %v938, 0
      %v1003 = vmax.bf16 %v939, 0
      %v1004 = vmax.bf16 %v940, 0
      %v1005 = vmax.bf16 %v941, 0
      %v1006 = vmax.bf16 %v942, 0
      %v1007 = vmax.bf16 %v943, 0
      %v1008 = vmax.bf16 %v944, 0
      %v1009 = vmax.bf16 %v945, 0
      %v1010 = vmax.bf16 %v946, 0
      %v1011 = vmax.bf16 %v947, 0
      %v1012 = vmax.bf16 %v948, 0
      %v1013 = vmax.bf16 %v949, 0
      %v1014 = vmax.bf16 %v950, 0
      %v1015 = vmax.bf16 %v951, 0
      %v1016 = vmax.bf16 %v952, 0
      %v1017 = vmax.bf16 %v953, 0
      %v1018 = vmax.bf16 %v954, 0
      %v1019 = vmax.bf16 %v955, 0
      %v1020 = vmax.bf16 %v956, 0
      %v1021 = vmax.bf16 %v957, 0
      %v1022 = vmax.bf16 %v958, 0
      %v1023 = vmax.bf16 %v959, 0
      %v1024 = vmax.bf16 %v960, 0
      %v1025 = vmax.bf16 %v961, 0
      %v1026 = vmax.bf16 %v962, 0
      %v1027 = vmax.bf16 %v963, 0
      %v1028 = vmax.bf16 %v964, 0
      %v1029 = vmax.bf16 %v965, 0
      %v1030 = vmax.bf16 %v966, 0
      %v1031 = vmax.bf16 %v967, 0
      %v1032 = vmax.bf16 %v968, 0
      %v1033 = vld [vmem:[%s2] sm:$0xf]
      %v1034 = vld [vmem:[%s2 + $0x4] sm:$0xf]
      %v1035 = vld [vmem:[%s2 + $0x8] sm:$0xf]
      %v1036 = vld [vmem:[%s2 + $0xc] sm:$0xf]
      %v1037 = vld [vmem:[%s2 + $0x10] sm:$0xf]
      %v1038 = vld [vmem:[%s2 + $0x14] sm:$0xf]
      %v1039 = vld [vmem:[%s2 + $0x18] sm:$0xf]
      %v1040 = vld [vmem:[%s2 + $0x1c] sm:$0xf]
      %v1041 = vld [vmem:[%s2 + $0x20] sm:$0xf]
      %v1042 = vld [vmem:[%s2 + $0x24] sm:$0xf]
      %v1043 = vld [vmem:[%s2 + $0x28] sm:$0xf]
      %v1044 = vld [vmem:[%s2 + $0x2c] sm:$0xf]
      %v1045 = vld [vmem:[%s2 + $0x30] sm:$0xf]
      %v1046 = vld [vmem:[%s2 + $0x34] sm:$0xf]
      %v1047 = vld [vmem:[%s2 + $0x38] sm:$0xf]
      %v1048 = vld [vmem:[%s2 + $0x3c] sm:$0xf]
      %v1049 = vld [vmem:[%s2 + $0x40] sm:$0xf]
      %v1050 = vld [vmem:[%s2 + $0x44] sm:$0xf]
      %v1051 = vld [vmem:[%s2 + $0x48] sm:$0xf]
      %v1052 = vld [vmem:[%s2 + $0x4c] sm:$0xf]
      %v1053 = vld [vmem:[%s2 + $0x50] sm:$0xf]
      %v1054 = vld [vmem:[%s2 + $0x54] sm:$0xf]
      %v1055 = vld [vmem:[%s2 + $0x58] sm:$0xf]
      %v1056 = vld [vmem:[%s2 + $0x5c] sm:$0xf]
      %v1057 = vld [vmem:[%s2 + $0x60] sm:$0xf]
      %v1058 = vld [vmem:[%s2 + $0x64] sm:$0xf]
      %v1059 = vld [vmem:[%s2 + $0x68] sm:$0xf]
      %v1060 = vld [vmem:[%s2 + $0x6c] sm:$0xf]
      %v1061 = vld [vmem:[%s2 + $0x70] sm:$0xf]
      %v1062 = vld [vmem:[%s2 + $0x74] sm:$0xf]
      %v1063 = vld [vmem:[%s2 + $0x78] sm:$0xf]
      %v1064 = vld [vmem:[%s2 + $0x7c] sm:$0xf]
      %v1065 = vld [vmem:[%s2 + $0x80] sm:$0xf]
      %v1066 = vld [vmem:[%s2 + $0x84] sm:$0xf]
      %v1067 = vld [vmem:[%s2 + $0x88] sm:$0xf]
      %v1068 = vld [vmem:[%s2 + $0x8c] sm:$0xf]
      %v1069 = vld [vmem:[%s2 + $0x90] sm:$0xf]
      %v1070 = vld [vmem:[%s2 + $0x94] sm:$0xf]
      %v1071 = vld [vmem:[%s2 + $0x98] sm:$0xf]
      %v1072 = vld [vmem:[%s2 + $0x9c] sm:$0xf]
      %v1073 = vld [vmem:[%s2 + $0xa0] sm:$0xf]
      %v1074 = vld [vmem:[%s2 + $0xa4] sm:$0xf]
      %v1075 = vld [vmem:[%s2 + $0xa8] sm:$0xf]
      %v1076 = vld [vmem:[%s2 + $0xac] sm:$0xf]
      %v1077 = vld [vmem:[%s2 + $0xb0] sm:$0xf]
      %v1078 = vld [vmem:[%s2 + $0xb4] sm:$0xf]
      %v1079 = vld [vmem:[%s2 + $0xb8] sm:$0xf]
      %v1080 = vld [vmem:[%s2 + $0xbc] sm:$0xf]
      %v1081 = vld [vmem:[%s2 + $0xc0] sm:$0xf]
      %v1082 = vld [vmem:[%s2 + $0xc4] sm:$0xf]
      %v1083 = vld [vmem:[%s2 + $0xc8] sm:$0xf]
      %v1084 = vld [vmem:[%s2 + $0xcc] sm:$0xf]
      %v1085 = vld [vmem:[%s2 + $0xd0] sm:$0xf]
      %v1086 = vld [vmem:[%s2 + $0xd4] sm:$0xf]
      %v1087 = vld [vmem:[%s2 + $0xd8] sm:$0xf]
      %v1088 = vld [vmem:[%s2 + $0xdc] sm:$0xf]
      %v1089 = vld [vmem:[%s2 + $0xe0] sm:$0xf]
      %v1090 = vld [vmem:[%s2 + $0xe4] sm:$0xf]
      %v1091 = vld [vmem:[%s2 + $0xe8] sm:$0xf]
      %v1092 = vld [vmem:[%s2 + $0xec] sm:$0xf]
      %v1093 = vld [vmem:[%s2 + $0xf0] sm:$0xf]
      %v1094 = vld [vmem:[%s2 + $0xf4] sm:$0xf]
      %v1095 = vld [vmem:[%s2 + $0xf8] sm:$0xf]
      %v1096 = vld [vmem:[%s2 + $0xfc] sm:$0xf]
      %v1097 = vld [vmem:[%s5 + $0x1] sm:$0x1]
      %v1098 = vlaneseq
      %v1099 = vshrl.u32 %v1098, 7
      %v1100 = vsub.s32 0, %v1099
      %v1101 = vrot.slane %v1097, %v1100
      %v1166 = vunpack.c.l.b16 %v1033
      %v1167 = vunpack.c.l.b16 %v1034
      %v1168 = vunpack.c.l.b16 %v1035
      %v1169 = vunpack.c.l.b16 %v1036
      %v1170 = vunpack.c.l.b16 %v1037
      %v1171 = vunpack.c.l.b16 %v1038
      %v1172 = vunpack.c.l.b16 %v1039
      %v1173 = vunpack.c.l.b16 %v1040
      %v1174 = vunpack.c.l.b16 %v1041
      %v1175 = vunpack.c.l.b16 %v1042
      %v1176 = vunpack.c.l.b16 %v1043
      %v1177 = vunpack.c.l.b16 %v1044
      %v1178 = vunpack.c.l.b16 %v1045
      %v1179 = vunpack.c.l.b16 %v1046
      %v1180 = vunpack.c.l.b16 %v1047
      %v1181 = vunpack.c.l.b16 %v1048
      %v1182 = vunpack.c.l.b16 %v1049
      %v1183 = vunpack.c.l.b16 %v1050
      %v1184 = vunpack.c.l.b16 %v1051
      %v1185 = vunpack.c.l.b16 %v1052
      %v1186 = vunpack.c.l.b16 %v1053
      %v1187 = vunpack.c.l.b16 %v1054
      %v1188 = vunpack.c.l.b16 %v1055
      %v1189 = vunpack.c.l.b16 %v1056
      %v1190 = vunpack.c.l.b16 %v1057
      %v1191 = vunpack.c.l.b16 %v1058
      %v1192 = vunpack.c.l.b16 %v1059
      %v1193 = vunpack.c.l.b16 %v1060
      %v1194 = vunpack.c.l.b16 %v1061
      %v1195 = vunpack.c.l.b16 %v1062
      %v1196 = vunpack.c.l.b16 %v1063
      %v1197 = vunpack.c.l.b16 %v1064
      %v1198 = vunpack.c.l.b16 %v1065
      %v1199 = vunpack.c.l.b16 %v1066
      %v1200 = vunpack.c.l.b16 %v1067
      %v1201 = vunpack.c.l.b16 %v1068
      %v1202 = vunpack.c.l.b16 %v1069
      %v1203 = vunpack.c.l.b16 %v1070
      %v1204 = vunpack.c.l.b16 %v1071
      %v1205 = vunpack.c.l.b16 %v1072
      %v1206 = vunpack.c.l.b16 %v1073
      %v1207 = vunpack.c.l.b16 %v1074
      %v1208 = vunpack.c.l.b16 %v1075
      %v1209 = vunpack.c.l.b16 %v1076
      %v1210 = vunpack.c.l.b16 %v1077
      %v1211 = vunpack.c.l.b16 %v1078
      %v1212 = vunpack.c.l.b16 %v1079
      %v1213 = vunpack.c.l.b16 %v1080
      %v1214 = vunpack.c.l.b16 %v1081
      %v1215 = vunpack.c.l.b16 %v1082
      %v1216 = vunpack.c.l.b16 %v1083
      %v1217 = vunpack.c.l.b16 %v1084
      %v1218 = vunpack.c.l.b16 %v1085
      %v1219 = vunpack.c.l.b16 %v1086
      %v1220 = vunpack.c.l.b16 %v1087
      %v1221 = vunpack.c.l.b16 %v1088
      %v1222 = vunpack.c.l.b16 %v1089
      %v1223 = vunpack.c.l.b16 %v1090
      %v1224 = vunpack.c.l.b16 %v1091
      %v1225 = vunpack.c.l.b16 %v1092
      %v1226 = vunpack.c.l.b16 %v1093
      %v1227 = vunpack.c.l.b16 %v1094
      %v1228 = vunpack.c.l.b16 %v1095
      %v1229 = vunpack.c.l.b16 %v1096
      %v1230 = vpack.c.b16 %v1167, %v1166
      %v1231 = vpack.c.b16 %v1169, %v1168
      %v1232 = vpack.c.b16 %v1171, %v1170
      %v1233 = vpack.c.b16 %v1173, %v1172
      %v1234 = vpack.c.b16 %v1175, %v1174
      %v1235 = vpack.c.b16 %v1177, %v1176
      %v1236 = vpack.c.b16 %v1179, %v1178
      %v1237 = vpack.c.b16 %v1181, %v1180
      %v1238 = vpack.c.b16 %v1183, %v1182
      %v1239 = vpack.c.b16 %v1185, %v1184
      %v1240 = vpack.c.b16 %v1187, %v1186
      %v1241 = vpack.c.b16 %v1189, %v1188
      %v1242 = vpack.c.b16 %v1191, %v1190
      %v1243 = vpack.c.b16 %v1193, %v1192
      %v1244 = vpack.c.b16 %v1195, %v1194
      %v1245 = vpack.c.b16 %v1197, %v1196
      %v1246 = vpack.c.b16 %v1199, %v1198
      %v1247 = vpack.c.b16 %v1201, %v1200
      %v1248 = vpack.c.b16 %v1203, %v1202
      %v1249 = vpack.c.b16 %v1205, %v1204
      %v1250 = vpack.c.b16 %v1207, %v1206
      %v1251 = vpack.c.b16 %v1209, %v1208
      %v1252 = vpack.c.b16 %v1211, %v1210
      %v1253 = vpack.c.b16 %v1213, %v1212
      %v1254 = vpack.c.b16 %v1215, %v1214
      %v1255 = vpack.c.b16 %v1217, %v1216
      %v1256 = vpack.c.b16 %v1219, %v1218
      %v1257 = vpack.c.b16 %v1221, %v1220
      %v1258 = vpack.c.b16 %v1223, %v1222
      %v1259 = vpack.c.b16 %v1225, %v1224
      %v1260 = vpack.c.b16 %v1227, %v1226
      %v1261 = vpack.c.b16 %v1229, %v1228
      %1294 = vmatprep.subr.bf16.mxu0 0
      %1295 = vmatpush1.bf16.msra.mxu0 %v1230
      %1296 = vmatprep.subr.bf16.mxu0 0
      %1297 = vmatpush1.bf16.msra.mxu0 %v1231
      %1298 = vmatprep.subr.bf16.mxu0 0
      %1299 = vmatpush1.bf16.msra.mxu0 %v1232
      %1300 = vmatprep.subr.bf16.mxu0 0
      %1301 = vmatpush1.bf16.msra.mxu0 %v1233
      %1302 = vmatprep.subr.bf16.mxu0 0
      %1303 = vmatpush1.bf16.msra.mxu0 %v1234
      %1304 = vmatprep.subr.bf16.mxu0 0
      %1305 = vmatpush1.bf16.msra.mxu0 %v1235
      %1306 = vmatprep.subr.bf16.mxu0 0
      %1307 = vmatpush1.bf16.msra.mxu0 %v1236
      %1308 = vmatprep.subr.bf16.mxu0 0
      %1309 = vmatpush1.bf16.msra.mxu0 %v1237
      %1310 = vmatprep.subr.bf16.mxu0 0
      %1311 = vmatpush1.bf16.msra.mxu0 %v1238
      %1312 = vmatprep.subr.bf16.mxu0 0
      %1313 = vmatpush1.bf16.msra.mxu0 %v1239
      %1314 = vmatprep.subr.bf16.mxu0 0
      %1315 = vmatpush1.bf16.msra.mxu0 %v1240
      %1316 = vmatprep.subr.bf16.mxu0 0
      %1317 = vmatpush1.bf16.msra.mxu0 %v1241
      %1318 = vmatprep.subr.bf16.mxu0 0
      %1319 = vmatpush1.bf16.msra.mxu0 %v1242
      %1320 = vmatprep.subr.bf16.mxu0 0
      %1321 = vmatpush1.bf16.msra.mxu0 %v1243
      %1322 = vmatprep.subr.bf16.mxu0 0
      %1323 = vmatpush1.bf16.msra.mxu0 %v1244
      %1324 = vmatprep.subr.bf16.mxu0 0
      %1325 = vmatpush1.bf16.msra.mxu0 %v1245
      %1326 = vmatprep.mubr.bf16.mxu0 %v970
      %1327 = vmatmul.mubr.bf16.gmra.mrb[0].mxu0 %v969
      %v1328 = vpop.f32.mrb[0].mxu0
      %v1329 = vadd.f32 %v1101, %v1328
      %v1330 = vpop.f32.mrb[0].mxu0
      %v1331 = vpop.f32.mrb[0].mxu0
      %v1332 = vadd.f32 %v1101, %v1331
      %v1333 = vpop.f32.mrb[0].mxu0
      %1334 = vmatprep.mubr.bf16.mxu0 %v974
      %1335 = vmatmul.mubr.bf16.gmra.mrb[0].mxu0 %v973
      %v1336 = vpop.f32.mrb[0].mxu0
      %v1337 = vadd.f32 %v1101, %v1336
      %v1338 = vpop.f32.mrb[0].mxu0
      %v1339 = vpop.f32.mrb[0].mxu0
      %v1340 = vadd.f32 %v1101, %v1339
      %v1341 = vpop.f32.mrb[0].mxu0
      %1342 = vmatprep.mubr.bf16.mxu0 %v978
      %1343 = vmatmul.mubr.bf16.gmra.mrb[0].mxu0 %v977
      %v1344 = vpop.f32.mrb[0].mxu0
      %v1345 = vadd.f32 %v1101, %v1344
      %v1346 = vpop.f32.mrb[0].mxu0
      %v1347 = vpop.f32.mrb[0].mxu0
      %v1348 = vadd.f32 %v1101, %v1347
      %v1349 = vpop.f32.mrb[0].mxu0
      %1350 = vmatprep.mubr.bf16.mxu0 %v982
      %1351 = vmatmul.mubr.bf16.gmra.mrb[0].mxu0 %v981
      %v1352 = vpop.f32.mrb[0].mxu0
      %v1353 = vadd.f32 %v1101, %v1352
      %v1354 = vpop.f32.mrb[0].mxu0
      %v1355 = vpop.f32.mrb[0].mxu0
      %v1356 = vadd.f32 %v1101, %v1355
      %v1357 = vpop.f32.mrb[0].mxu0
      %1358 = vmatprep.mubr.bf16.mxu0 %v986
      %1359 = vmatmul.mubr.bf16.gmra.mrb[0].mxu0 %v985
      %v1360 = vpop.f32.mrb[0].mxu0
      %v1361 = vadd.f32 %v1101, %v1360
      %v1362 = vpop.f32.mrb[0].mxu0
      %v1363 = vpop.f32.mrb[0].mxu0
      %v1364 = vadd.f32 %v1101, %v1363
      %v1365 = vpop.f32.mrb[0].mxu0
      %1366 = vmatprep.mubr.bf16.mxu0 %v990
      %1367 = vmatmul.mubr.bf16.gmra.mrb[0].mxu0 %v989
      %v1368 = vpop.f32.mrb[0].mxu0
      %v1369 = vadd.f32 %v1101, %v1368
      %v1370 = vpop.f32.mrb[0].mxu0
      %v1371 = vpop.f32.mrb[0].mxu0
      %v1372 = vadd.f32 %v1101, %v1371
      %v1373 = vpop.f32.mrb[0].mxu0
      %1374 = vmatprep.mubr.bf16.mxu0 %v994
      %1375 = vmatmul.mubr.bf16.gmra.mrb[0].mxu0 %v993
      %v1376 = vpop.f32.mrb[0].mxu0
      %v1377 = vadd.f32 %v1101, %v1376
      %v1378 = vpop.f32.mrb[0].mxu0
      %v1379 = vpop.f32.mrb[0].mxu0
      %v1380 = vadd.f32 %v1101, %v1379
      %v1381 = vpop.f32.mrb[0].mxu0
      %1382 = vmatprep.mubr.bf16.mxu0 %v998
      %1383 = vmatmul.mubr.bf16.gmra.mrb[0].mxu0 %v997
      %v1384 = vpop.f32.mrb[0].mxu0
      %v1385 = vadd.f32 %v1101, %v1384
      %v1386 = vpop.f32.mrb[0].mxu0
      %v1387 = vpop.f32.mrb[0].mxu0
      %v1388 = vadd.f32 %v1101, %v1387
      %v1389 = vpop.f32.mrb[0].mxu0
      %1390 = vmatprep.mubr.bf16.mxu0 %v1002
      %1391 = vmatmul.mubr.bf16.gmra.mrb[0].mxu0 %v1001
      %v1392 = vpop.f32.mrb[0].mxu0
      %v1393 = vadd.f32 %v1101, %v1392
      %v1394 = vpop.f32.mrb[0].mxu0
      %v1395 = vpop.f32.mrb[0].mxu0
      %v1396 = vadd.f32 %v1101, %v1395
      %v1397 = vpop.f32.mrb[0].mxu0
      %1398 = vmatprep.mubr.bf16.mxu0 %v1006
      %1399 = vmatmul.mubr.bf16.gmra.mrb[0].mxu0 %v1005
      %v1400 = vpop.f32.mrb[0].mxu0
      %v1401 = vadd.f32 %v1101, %v1400
      %v1402 = vpop.f32.mrb[0].mxu0
      %v1403 = vpop.f32.mrb[0].mxu0
      %v1404 = vadd.f32 %v1101, %v1403
      %v1405 = vpop.f32.mrb[0].mxu0
      %1406 = vmatprep.mubr.bf16.mxu0 %v1010
      %1407 = vmatmul.mubr.bf16.gmra.mrb[0].mxu0 %v1009
      %v1408 = vpop.f32.mrb[0].mxu0
      %v1409 = vadd.f32 %v1101, %v1408
      %v1410 = vpop.f32.mrb[0].mxu0
      %v1411 = vpop.f32.mrb[0].mxu0
      %v1412 = vadd.f32 %v1101, %v1411
      %v1413 = vpop.f32.mrb[0].mxu0
      %1414 = vmatprep.mubr.bf16.mxu0 %v1014
      %1415 = vmatmul.mubr.bf16.gmra.mrb[0].mxu0 %v1013
      %v1416 = vpop.f32.mrb[0].mxu0
      %v1417 = vadd.f32 %v1101, %v1416
      %v1418 = vpop.f32.mrb[0].mxu0
      %v1419 = vpop.f32.mrb[0].mxu0
      %v1420 = vadd.f32 %v1101, %v1419
      %v1421 = vpop.f32.mrb[0].mxu0
      %1422 = vmatprep.mubr.bf16.mxu0 %v1018
      %1423 = vmatmul.mubr.bf16.gmra.mrb[0].mxu0 %v1017
      %v1424 = vpop.f32.mrb[0].mxu0
      %v1425 = vadd.f32 %v1101, %v1424
      %v1426 = vpop.f32.mrb[0].mxu0
      %v1427 = vpop.f32.mrb[0].mxu0
      %v1428 = vadd.f32 %v1101, %v1427
      %v1429 = vpop.f32.mrb[0].mxu0
      %1430 = vmatprep.mubr.bf16.mxu0 %v1022
      %1431 = vmatmul.mubr.bf16.gmra.mrb[0].mxu0 %v1021
      %v1432 = vpop.f32.mrb[0].mxu0
      %v1433 = vadd.f32 %v1101, %v1432
      %v1434 = vpop.f32.mrb[0].mxu0
      %v1435 = vpop.f32.mrb[0].mxu0
      %v1436 = vadd.f32 %v1101, %v1435
      %v1437 = vpop.f32.mrb[0].mxu0
      %1438 = vmatprep.mubr.bf16.mxu0 %v1026
      %1439 = vmatmul.mubr.bf16.gmra.mrb[0].mxu0 %v1025
      %v1440 = vpop.f32.mrb[0].mxu0
      %v1441 = vadd.f32 %v1101, %v1440
      %v1442 = vpop.f32.mrb[0].mxu0
      %v1443 = vpop.f32.mrb[0].mxu0
      %v1444 = vadd.f32 %v1101, %v1443
      %v1445 = vpop.f32.mrb[0].mxu0
      %1446 = vmatprep.mubr.bf16.mxu0 %v1030
      %1447 = vmatmul.mubr.bf16.gmra.mrb[0].mxu0 %v1029
      %v1448 = vpop.f32.mrb[0].mxu0
      %v1449 = vadd.f32 %v1101, %v1448
      %v1450 = vpop.f32.mrb[0].mxu0
      %v1451 = vpop.f32.mrb[0].mxu0
      %v1452 = vadd.f32 %v1101, %v1451
      %v1453 = vpop.f32.mrb[0].mxu0
      %1454 = vdwg.mxu0
      %1455 = vmatprep.subr.bf16.mxu0 0
      %1456 = vmatpush1.bf16.msra.mxu0 %v1246
      %1457 = vmatprep.subr.bf16.mxu0 0
      %1458 = vmatpush1.bf16.msra.mxu0 %v1247
      %1459 = vmatprep.subr.bf16.mxu0 0
      %1460 = vmatpush1.bf16.msra.mxu0 %v1248
      %1461 = vmatprep.subr.bf16.mxu0 0
      %1462 = vmatpush1.bf16.msra.mxu0 %v1249
      %1463 = vmatprep.subr.bf16.mxu0 0
      %1464 = vmatpush1.bf16.msra.mxu0 %v1250
      %1465 = vmatprep.subr.bf16.mxu0 0
      %1466 = vmatpush1.bf16.msra.mxu0 %v1251
      %1467 = vmatprep.subr.bf16.mxu0 0
      %1468 = vmatpush1.bf16.msra.mxu0 %v1252
      %1469 = vmatprep.subr.bf16.mxu0 0
      %1470 = vmatpush1.bf16.msra.mxu0 %v1253
      %1471 = vmatprep.subr.bf16.mxu0 0
      %1472 = vmatpush1.bf16.msra.mxu0 %v1254
      %1473 = vmatprep.subr.bf16.mxu0 0
      %1474 = vmatpush1.bf16.msra.mxu0 %v1255
      %1475 = vmatprep.subr.bf16.mxu0 0
      %1476 = vmatpush1.bf16.msra.mxu0 %v1256
      %1477 = vmatprep.subr.bf16.mxu0 0
      %1478 = vmatpush1.bf16.msra.mxu0 %v1257
      %1479 = vmatprep.subr.bf16.mxu0 0
      %1480 = vmatpush1.bf16.msra.mxu0 %v1258
      %1481 = vmatprep.subr.bf16.mxu0 0
      %1482 = vmatpush1.bf16.msra.mxu0 %v1259
      %1483 = vmatprep.subr.bf16.mxu0 0
      %1484 = vmatpush1.bf16.msra.mxu0 %v1260
      %1485 = vmatprep.subr.bf16.mxu0 0
      %1486 = vmatpush1.bf16.msra.mxu0 %v1261
      %1487 = vmatprep.mubr.bf16.mxu0 %v972
      %1488 = vmatmul.mubr.bf16.gmra.mrb[0].mxu0 %v971
      %v1489 = vpop.f32.mrb[0].mxu0
      %v1490 = vadd.f32 %v1329, %v1489
      %v1491 = vpop.f32.mrb[0].mxu0
      %v1492 = vpop.f32.mrb[0].mxu0
      %v1493 = vadd.f32 %v1332, %v1492
      %v1494 = vpop.f32.mrb[0].mxu0
      %1495 = vmatprep.mubr.bf16.mxu0 %v976
      %1496 = vmatmul.mubr.bf16.gmra.mrb[0].mxu0 %v975
      %v1497 = vpop.f32.mrb[0].mxu0
      %v1498 = vadd.f32 %v1337, %v1497
      %v1499 = vpop.f32.mrb[0].mxu0
      %v1500 = vpop.f32.mrb[0].mxu0
      %v1501 = vadd.f32 %v1340, %v1500
      %v1502 = vpop.f32.mrb[0].mxu0
      %1503 = vmatprep.mubr.bf16.mxu0 %v980
      %1504 = vmatmul.mubr.bf16.gmra.mrb[0].mxu0 %v979
      %v1505 = vpop.f32.mrb[0].mxu0
      %v1506 = vadd.f32 %v1345, %v1505
      %v1507 = vpop.f32.mrb[0].mxu0
      %v1508 = vpop.f32.mrb[0].mxu0
      %v1509 = vadd.f32 %v1348, %v1508
      %v1510 = vpop.f32.mrb[0].mxu0
      %1511 = vmatprep.mubr.bf16.mxu0 %v984
      %1512 = vmatmul.mubr.bf16.gmra.mrb[0].mxu0 %v983
      %v1513 = vpop.f32.mrb[0].mxu0
      %v1514 = vadd.f32 %v1353, %v1513
      %v1515 = vpop.f32.mrb[0].mxu0
      %v1516 = vpop.f32.mrb[0].mxu0
      %v1517 = vadd.f32 %v1356, %v1516
      %v1518 = vpop.f32.mrb[0].mxu0
      %1519 = vmatprep.mubr.bf16.mxu0 %v988
      %1520 = vmatmul.mubr.bf16.gmra.mrb[0].mxu0 %v987
      %v1521 = vpop.f32.mrb[0].mxu0
      %v1522 = vadd.f32 %v1361, %v1521
      %v1523 = vpop.f32.mrb[0].mxu0
      %v1524 = vpop.f32.mrb[0].mxu0
      %v1525 = vadd.f32 %v1364, %v1524
      %v1526 = vpop.f32.mrb[0].mxu0
      %1527 = vmatprep.mubr.bf16.mxu0 %v992
      %1528 = vmatmul.mubr.bf16.gmra.mrb[0].mxu0 %v991
      %v1529 = vpop.f32.mrb[0].mxu0
      %v1530 = vadd.f32 %v1369, %v1529
      %v1531 = vpop.f32.mrb[0].mxu0
      %v1532 = vpop.f32.mrb[0].mxu0
      %v1533 = vadd.f32 %v1372, %v1532
      %v1534 = vpop.f32.mrb[0].mxu0
      %1535 = vmatprep.mubr.bf16.mxu0 %v996
      %1536 = vmatmul.mubr.bf16.gmra.mrb[0].mxu0 %v995
      %v1537 = vpop.f32.mrb[0].mxu0
      %v1538 = vadd.f32 %v1377, %v1537
      %v1539 = vpop.f32.mrb[0].mxu0
      %v1540 = vpop.f32.mrb[0].mxu0
      %v1541 = vadd.f32 %v1380, %v1540
      %v1542 = vpop.f32.mrb[0].mxu0
      %1543 = vmatprep.mubr.bf16.mxu0 %v1000
      %1544 = vmatmul.mubr.bf16.gmra.mrb[0].mxu0 %v999
      %v1545 = vpop.f32.mrb[0].mxu0
      %v1546 = vadd.f32 %v1385, %v1545
      %v1547 = vpop.f32.mrb[0].mxu0
      %v1548 = vpop.f32.mrb[0].mxu0
      %v1549 = vadd.f32 %v1388, %v1548
      %v1550 = vpop.f32.mrb[0].mxu0
      %1551 = vmatprep.mubr.bf16.mxu0 %v1004
      %1552 = vmatmul.mubr.bf16.gmra.mrb[0].mxu0 %v1003
      %v1553 = vpop.f32.mrb[0].mxu0
      %v1554 = vadd.f32 %v1393, %v1553
      %v1555 = vpop.f32.mrb[0].mxu0
      %v1556 = vpop.f32.mrb[0].mxu0
      %v1557 = vadd.f32 %v1396, %v1556
      %v1558 = vpop.f32.mrb[0].mxu0
      %1559 = vmatprep.mubr.bf16.mxu0 %v1008
      %1560 = vmatmul.mubr.bf16.gmra.mrb[0].mxu0 %v1007
      %v1561 = vpop.f32.mrb[0].mxu0
      %v1562 = vadd.f32 %v1401, %v1561
      %v1563 = vpop.f32.mrb[0].mxu0
      %v1564 = vpop.f32.mrb[0].mxu0
      %v1565 = vadd.f32 %v1404, %v1564
      %v1566 = vpop.f32.mrb[0].mxu0
      %1567 = vmatprep.mubr.bf16.mxu0 %v1012
      %1568 = vmatmul.mubr.bf16.gmra.mrb[0].mxu0 %v1011
      %v1569 = vpop.f32.mrb[0].mxu0
      %v1570 = vadd.f32 %v1409, %v1569
      %v1571 = vpop.f32.mrb[0].mxu0
      %v1572 = vpop.f32.mrb[0].mxu0
      %v1573 = vadd.f32 %v1412, %v1572
      %v1574 = vpop.f32.mrb[0].mxu0
      %1575 = vmatprep.mubr.bf16.mxu0 %v1016
      %1576 = vmatmul.mubr.bf16.gmra.mrb[0].mxu0 %v1015
      %v1577 = vpop.f32.mrb[0].mxu0
      %v1578 = vadd.f32 %v1417, %v1577
      %v1579 = vpop.f32.mrb[0].mxu0
      %v1580 = vpop.f32.mrb[0].mxu0
      %v1581 = vadd.f32 %v1420, %v1580
      %v1582 = vpop.f32.mrb[0].mxu0
      %1583 = vmatprep.mubr.bf16.mxu0 %v1020
      %1584 = vmatmul.mubr.bf16.gmra.mrb[0].mxu0 %v1019
      %v1585 = vpop.f32.mrb[0].mxu0
      %v1586 = vadd.f32 %v1425, %v1585
      %v1587 = vpop.f32.mrb[0].mxu0
      %v1588 = vpop.f32.mrb[0].mxu0
      %v1589 = vadd.f32 %v1428, %v1588
      %v1590 = vpop.f32.mrb[0].mxu0
      %1591 = vmatprep.mubr.bf16.mxu0 %v1024
      %1592 = vmatmul.mubr.bf16.gmra.mrb[0].mxu0 %v1023
      %v1593 = vpop.f32.mrb[0].mxu0
      %v1594 = vadd.f32 %v1433, %v1593
      %v1595 = vpop.f32.mrb[0].mxu0
      %v1596 = vpop.f32.mrb[0].mxu0
      %v1597 = vadd.f32 %v1436, %v1596
      %v1598 = vpop.f32.mrb[0].mxu0
      %1599 = vmatprep.mubr.bf16.mxu0 %v1028
      %1600 = vmatmul.mubr.bf16.gmra.mrb[0].mxu0 %v1027
      %v1601 = vpop.f32.mrb[0].mxu0
      %v1602 = vadd.f32 %v1441, %v1601
      %v1603 = vpop.f32.mrb[0].mxu0
      %v1604 = vpop.f32.mrb[0].mxu0
      %v1605 = vadd.f32 %v1444, %v1604
      %v1606 = vpop.f32.mrb[0].mxu0
      %1607 = vmatprep.mubr.bf16.mxu0 %v1032
      %1608 = vmatmul.mubr.bf16.gmra.mrb[0].mxu0 %v1031
      %v1609 = vpop.f32.mrb[0].mxu0
      %v1610 = vadd.f32 %v1449, %v1609
      %v1611 = vpop.f32.mrb[0].mxu0
      %v1612 = vpop.f32.mrb[0].mxu0
      %v1613 = vadd.f32 %v1452, %v1612
      %v1614 = vpop.f32.mrb[0].mxu0
      %1615 = vdwg.mxu0
      %v1616 = vmax.f32 %v1490, 0.0
      %v1617 = vmax.f32 %v1493, 0.0
      %v1618 = vmax.f32 %v1498, 0.0
      %v1619 = vmax.f32 %v1501, 0.0
      %v1620 = vmax.f32 %v1506, 0.0
      %v1621 = vmax.f32 %v1509, 0.0
      %v1622 = vmax.f32 %v1514, 0.0
      %v1623 = vmax.f32 %v1517, 0.0
      %v1624 = vmax.f32 %v1522, 0.0
      %v1625 = vmax.f32 %v1525, 0.0
      %v1626 = vmax.f32 %v1530, 0.0
      %v1627 = vmax.f32 %v1533, 0.0
      %v1628 = vmax.f32 %v1538, 0.0
      %v1629 = vmax.f32 %v1541, 0.0
      %v1630 = vmax.f32 %v1546, 0.0
      %v1631 = vmax.f32 %v1549, 0.0
      %v1632 = vmax.f32 %v1554, 0.0
      %v1633 = vmax.f32 %v1557, 0.0
      %v1634 = vmax.f32 %v1562, 0.0
      %v1635 = vmax.f32 %v1565, 0.0
      %v1636 = vmax.f32 %v1570, 0.0
      %v1637 = vmax.f32 %v1573, 0.0
      %v1638 = vmax.f32 %v1578, 0.0
      %v1639 = vmax.f32 %v1581, 0.0
      %v1640 = vmax.f32 %v1586, 0.0
      %v1641 = vmax.f32 %v1589, 0.0
      %v1642 = vmax.f32 %v1594, 0.0
      %v1643 = vmax.f32 %v1597, 0.0
      %v1644 = vmax.f32 %v1602, 0.0
      %v1645 = vmax.f32 %v1605, 0.0
      %v1646 = vmax.f32 %v1610, 0.0
      %v1647 = vmax.f32 %v1613, 0.0
      %v1648 = vpack.c.bf16 %v1617, %v1616
      %v1649 = vpack.c.bf16 %v1619, %v1618
      %v1650 = vpack.c.bf16 %v1621, %v1620
      %v1651 = vpack.c.bf16 %v1623, %v1622
      %v1652 = vpack.c.bf16 %v1625, %v1624
      %v1653 = vpack.c.bf16 %v1627, %v1626
      %v1654 = vpack.c.bf16 %v1629, %v1628
      %v1655 = vpack.c.bf16 %v1631, %v1630
      %v1656 = vpack.c.bf16 %v1633, %v1632
      %v1657 = vpack.c.bf16 %v1635, %v1634
      %v1658 = vpack.c.bf16 %v1637, %v1636
      %v1659 = vpack.c.bf16 %v1639, %v1638
      %v1660 = vpack.c.bf16 %v1641, %v1640
      %v1661 = vpack.c.bf16 %v1643, %v1642
      %v1662 = vpack.c.bf16 %v1645, %v1644
      %v1663 = vpack.c.bf16 %v1647, %v1646
      %v1664 = vld [vmem:[%s3] sm:$0xf]
      %v1665 = vld [vmem:[%s3 + $0x4] sm:$0xf]
      %v1666 = vld [vmem:[%s3 + $0x8] sm:$0xf]
      %v1667 = vld [vmem:[%s3 + $0xc] sm:$0xf]
      %v1668 = vld [vmem:[%s3 + $0x10] sm:$0xf]
      %v1669 = vld [vmem:[%s3 + $0x14] sm:$0xf]
      %v1670 = vld [vmem:[%s3 + $0x18] sm:$0xf]
      %v1671 = vld [vmem:[%s3 + $0x1c] sm:$0xf]
      %v1672 = vld [vmem:[%s5 + $0x2] sm:$0x1]
      %v1673 = vlaneseq
      %v1674 = vshrl.u32 %v1673, 7
      %v1675 = vsub.s32 0, %v1674
      %v1676 = vrot.slane %v1672, %v1675
      %v1685 = vunpack.c.l.b16 %v1664
      %v1686 = vunpack.c.l.b16 %v1665
      %v1687 = vunpack.c.l.b16 %v1666
      %v1688 = vunpack.c.l.b16 %v1667
      %v1689 = vunpack.c.l.b16 %v1668
      %v1690 = vunpack.c.l.b16 %v1669
      %v1691 = vunpack.c.l.b16 %v1670
      %v1692 = vunpack.c.l.b16 %v1671
      %v1693 = vpack.c.b16 %v1686, %v1685
      %v1694 = vpack.c.b16 %v1688, %v1687
      %v1695 = vpack.c.b16 %v1690, %v1689
      %v1696 = vpack.c.b16 %v1692, %v1691
      %vm1701 = vcmask 523264
      %v1703 = vsel %vm1701, %v1648, 0
      %v1706 = vsel %vm1701, %v1649, 0
      %v1709 = vsel %vm1701, %v1650, 0
      %v1712 = vsel %vm1701, %v1651, 0
      %v1715 = vsel %vm1701, %v1652, 0
      %v1718 = vsel %vm1701, %v1653, 0
      %v1721 = vsel %vm1701, %v1654, 0
      %v1724 = vsel %vm1701, %v1655, 0
      %v1727 = vsel %vm1701, %v1656, 0
      %v1730 = vsel %vm1701, %v1657, 0
      %v1733 = vsel %vm1701, %v1658, 0
      %v1736 = vsel %vm1701, %v1659, 0
      %v1739 = vsel %vm1701, %v1660, 0
      %v1742 = vsel %vm1701, %v1661, 0
      %v1745 = vsel %vm1701, %v1662, 0
      %v1748 = vsel %vm1701, %v1663, 0
      %1750 = vmatprep.subr.bf16.mxu0 0
      %1751 = vmatpush1.bf16.msra.mxu0 %v1693
      %1752 = vmatprep.subr.bf16.mxu0 0
      %1753 = vmatpush1.bf16.msra.mxu0 %v1694
      %1754 = vmatprep.subr.bf16.mxu0 0
      %1755 = vmatpush1.bf16.msra.mxu0 %v1695
      %1756 = vmatprep.subr.bf16.mxu0 0
      %1757 = vmatpush1.bf16.msra.mxu0 %v1696
      %1758 = vmatprep.subr.bf16.mxu0 0
      %1759 = vmatpush1.bf16.msra.mxu0 0
      %1760 = vmatprep.subr.bf16.mxu0 0
      %1761 = vmatpush1.bf16.msra.mxu0 0
      %1762 = vmatprep.subr.bf16.mxu0 0
      %1763 = vmatpush1.bf16.msra.mxu0 0
      %1764 = vmatprep.subr.bf16.mxu0 0
      %1765 = vmatpush1.bf16.msra.mxu0 0
      %1766 = vmatprep.subr.bf16.mxu0 0
      %1767 = vmatpush1.bf16.msra.mxu0 0
      %1768 = vmatprep.subr.bf16.mxu0 0
      %1769 = vmatpush1.bf16.msra.mxu0 0
      %1770 = vmatprep.subr.bf16.mxu0 0
      %1771 = vmatpush1.bf16.msra.mxu0 0
      %1772 = vmatprep.subr.bf16.mxu0 0
      %1773 = vmatpush1.bf16.msra.mxu0 0
      %1774 = vmatprep.subr.bf16.mxu0 0
      %1775 = vmatpush1.bf16.msra.mxu0 0
      %1776 = vmatprep.subr.bf16.mxu0 0
      %1777 = vmatpush1.bf16.msra.mxu0 0
      %1778 = vmatprep.subr.bf16.mxu0 0
      %1779 = vmatpush1.bf16.msra.mxu0 0
      %1780 = vmatprep.subr.bf16.mxu0 0
      %1781 = vmatpush1.bf16.msra.mxu0 0
      %1782 = vmatprep.mubr.bf16.mxu0 0
      %1783 = vmatmul.mubr.bf16.gmra.mrb[0].mxu0 %v1703
      %v1784 = vpop.f32.mrb[0].mxu0
      %v1785 = vadd.f32 %v1676, %v1784
      %v1786 = vpop.f32.mrb[0].mxu0
      %v1787 = vpop.f32.mrb[0].mxu0
      %v1788 = vadd.f32 %v1676, %v1787
      %v1789 = vpop.f32.mrb[0].mxu0
      %1790 = vmatprep.mubr.bf16.mxu0 0
      %1791 = vmatmul.mubr.bf16.gmra.mrb[0].mxu0 %v1706
      %v1792 = vpop.f32.mrb[0].mxu0
      %v1793 = vadd.f32 %v1676, %v1792
      %v1794 = vpop.f32.mrb[0].mxu0
      %v1795 = vpop.f32.mrb[0].mxu0
      %v1796 = vadd.f32 %v1676, %v1795
      %v1797 = vpop.f32.mrb[0].mxu0
      %1798 = vmatprep.mubr.bf16.mxu0 0
      %1799 = vmatmul.mubr.bf16.gmra.mrb[0].mxu0 %v1709
      %v1800 = vpop.f32.mrb[0].mxu0
      %v1801 = vadd.f32 %v1676, %v1800
      %v1802 = vpop.f32.mrb[0].mxu0
      %v1803 = vpop.f32.mrb[0].mxu0
      %v1804 = vadd.f32 %v1676, %v1803
      %v1805 = vpop.f32.mrb[0].mxu0
      %1806 = vmatprep.mubr.bf16.mxu0 0
      %1807 = vmatmul.mubr.bf16.gmra.mrb[0].mxu0 %v1712
      %v1808 = vpop.f32.mrb[0].mxu0
      %v1809 = vadd.f32 %v1676, %v1808
      %v1810 = vpop.f32.mrb[0].mxu0
      %v1811 = vpop.f32.mrb[0].mxu0
      %v1812 = vadd.f32 %v1676, %v1811
      %v1813 = vpop.f32.mrb[0].mxu0
      %1814 = vmatprep.mubr.bf16.mxu0 0
      %1815 = vmatmul.mubr.bf16.gmra.mrb[0].mxu0 %v1715
      %v1816 = vpop.f32.mrb[0].mxu0
      %v1817 = vadd.f32 %v1676, %v1816
      %v1818 = vpop.f32.mrb[0].mxu0
      %v1819 = vpop.f32.mrb[0].mxu0
      %v1820 = vadd.f32 %v1676, %v1819
      %v1821 = vpop.f32.mrb[0].mxu0
      %1822 = vmatprep.mubr.bf16.mxu0 0
      %1823 = vmatmul.mubr.bf16.gmra.mrb[0].mxu0 %v1718
      %v1824 = vpop.f32.mrb[0].mxu0
      %v1825 = vadd.f32 %v1676, %v1824
      %v1826 = vpop.f32.mrb[0].mxu0
      %v1827 = vpop.f32.mrb[0].mxu0
      %v1828 = vadd.f32 %v1676, %v1827
      %v1829 = vpop.f32.mrb[0].mxu0
      %1830 = vmatprep.mubr.bf16.mxu0 0
      %1831 = vmatmul.mubr.bf16.gmra.mrb[0].mxu0 %v1721
      %v1832 = vpop.f32.mrb[0].mxu0
      %v1833 = vadd.f32 %v1676, %v1832
      %v1834 = vpop.f32.mrb[0].mxu0
      %v1835 = vpop.f32.mrb[0].mxu0
      %v1836 = vadd.f32 %v1676, %v1835
      %v1837 = vpop.f32.mrb[0].mxu0
      %1838 = vmatprep.mubr.bf16.mxu0 0
      %1839 = vmatmul.mubr.bf16.gmra.mrb[0].mxu0 %v1724
      %v1840 = vpop.f32.mrb[0].mxu0
      %v1841 = vadd.f32 %v1676, %v1840
      %v1842 = vpop.f32.mrb[0].mxu0
      %v1843 = vpop.f32.mrb[0].mxu0
      %v1844 = vadd.f32 %v1676, %v1843
      %v1845 = vpop.f32.mrb[0].mxu0
      %1846 = vmatprep.mubr.bf16.mxu0 0
      %1847 = vmatmul.mubr.bf16.gmra.mrb[0].mxu0 %v1727
      %v1848 = vpop.f32.mrb[0].mxu0
      %v1849 = vadd.f32 %v1676, %v1848
      %v1850 = vpop.f32.mrb[0].mxu0
      %v1851 = vpop.f32.mrb[0].mxu0
      %v1852 = vadd.f32 %v1676, %v1851
      %v1853 = vpop.f32.mrb[0].mxu0
      %1854 = vmatprep.mubr.bf16.mxu0 0
      %1855 = vmatmul.mubr.bf16.gmra.mrb[0].mxu0 %v1730
      %v1856 = vpop.f32.mrb[0].mxu0
      %v1857 = vadd.f32 %v1676, %v1856
      %v1858 = vpop.f32.mrb[0].mxu0
      %v1859 = vpop.f32.mrb[0].mxu0
      %v1860 = vadd.f32 %v1676, %v1859
      %v1861 = vpop.f32.mrb[0].mxu0
      %1862 = vmatprep.mubr.bf16.mxu0 0
      %1863 = vmatmul.mubr.bf16.gmra.mrb[0].mxu0 %v1733
      %v1864 = vpop.f32.mrb[0].mxu0
      %v1865 = vadd.f32 %v1676, %v1864
      %v1866 = vpop.f32.mrb[0].mxu0
      %v1867 = vpop.f32.mrb[0].mxu0
      %v1868 = vadd.f32 %v1676, %v1867
      %v1869 = vpop.f32.mrb[0].mxu0
      %1870 = vmatprep.mubr.bf16.mxu0 0
      %1871 = vmatmul.mubr.bf16.gmra.mrb[0].mxu0 %v1736
      %v1872 = vpop.f32.mrb[0].mxu0
      %v1873 = vadd.f32 %v1676, %v1872
      %v1874 = vpop.f32.mrb[0].mxu0
      %v1875 = vpop.f32.mrb[0].mxu0
      %v1876 = vadd.f32 %v1676, %v1875
      %v1877 = vpop.f32.mrb[0].mxu0
      %1878 = vmatprep.mubr.bf16.mxu0 0
      %1879 = vmatmul.mubr.bf16.gmra.mrb[0].mxu0 %v1739
      %v1880 = vpop.f32.mrb[0].mxu0
      %v1881 = vadd.f32 %v1676, %v1880
      %v1882 = vpop.f32.mrb[0].mxu0
      %v1883 = vpop.f32.mrb[0].mxu0
      %v1884 = vadd.f32 %v1676, %v1883
      %v1885 = vpop.f32.mrb[0].mxu0
      %1886 = vmatprep.mubr.bf16.mxu0 0
      %1887 = vmatmul.mubr.bf16.gmra.mrb[0].mxu0 %v1742
      %v1888 = vpop.f32.mrb[0].mxu0
      %v1889 = vadd.f32 %v1676, %v1888
      %v1890 = vpop.f32.mrb[0].mxu0
      %v1891 = vpop.f32.mrb[0].mxu0
      %v1892 = vadd.f32 %v1676, %v1891
      %v1893 = vpop.f32.mrb[0].mxu0
      %1894 = vmatprep.mubr.bf16.mxu0 0
      %1895 = vmatmul.mubr.bf16.gmra.mrb[0].mxu0 %v1745
      %v1896 = vpop.f32.mrb[0].mxu0
      %v1897 = vadd.f32 %v1676, %v1896
      %v1898 = vpop.f32.mrb[0].mxu0
      %v1899 = vpop.f32.mrb[0].mxu0
      %v1900 = vadd.f32 %v1676, %v1899
      %v1901 = vpop.f32.mrb[0].mxu0
      %1902 = vmatprep.mubr.bf16.mxu0 0
      %1903 = vmatmul.mubr.bf16.gmra.mrb[0].mxu0 %v1748
      %v1904 = vpop.f32.mrb[0].mxu0
      %v1905 = vadd.f32 %v1676, %v1904
      %v1906 = vpop.f32.mrb[0].mxu0
      %v1907 = vpop.f32.mrb[0].mxu0
      %v1908 = vadd.f32 %v1676, %v1907
      %v1909 = vpop.f32.mrb[0].mxu0
      %1910 = vdwg.mxu0
      %v1911 = vmax.f32 %v1785, 0.0
      %v1912 = vmax.f32 %v1788, 0.0
      %v1913 = vmax.f32 %v1793, 0.0
      %v1914 = vmax.f32 %v1796, 0.0
      %v1915 = vmax.f32 %v1801, 0.0
      %v1916 = vmax.f32 %v1804, 0.0
      %v1917 = vmax.f32 %v1809, 0.0
      %v1918 = vmax.f32 %v1812, 0.0
      %v1919 = vmax.f32 %v1817, 0.0
      %v1920 = vmax.f32 %v1820, 0.0
      %v1921 = vmax.f32 %v1825, 0.0
      %v1922 = vmax.f32 %v1828, 0.0
      %v1923 = vmax.f32 %v1833, 0.0
      %v1924 = vmax.f32 %v1836, 0.0
      %v1925 = vmax.f32 %v1841, 0.0
      %v1926 = vmax.f32 %v1844, 0.0
      %v1927 = vmax.f32 %v1849, 0.0
      %v1928 = vmax.f32 %v1852, 0.0
      %v1929 = vmax.f32 %v1857, 0.0
      %v1930 = vmax.f32 %v1860, 0.0
      %v1931 = vmax.f32 %v1865, 0.0
      %v1932 = vmax.f32 %v1868, 0.0
      %v1933 = vmax.f32 %v1873, 0.0
      %v1934 = vmax.f32 %v1876, 0.0
      %v1935 = vmax.f32 %v1881, 0.0
      %v1936 = vmax.f32 %v1884, 0.0
      %v1937 = vmax.f32 %v1889, 0.0
      %v1938 = vmax.f32 %v1892, 0.0
      %v1939 = vmax.f32 %v1897, 0.0
      %v1940 = vmax.f32 %v1900, 0.0
      %v1941 = vmax.f32 %v1905, 0.0
      %v1942 = vmax.f32 %v1908, 0.0
      %v1943 = vld [vmem:[%s4] sm:$0xff]
      %v1944 = vld [vmem:[%s4 + $0x8] sm:$0xff]
      %v1945 = vld [vmem:[%s5 + $0x3] sm:$0x1]
      %v1946 = vlaneseq
      %v1947 = vshrl.u32 %v1946, 7
      %v1948 = vsub.s32 0, %v1947
      %v1949 = vrot.slane %v1945, %v1948
      %vm1950 = vcmask 130048
      %v1952 = vsel %vm1950, %v1911, 0
      %v1955 = vsel %vm1950, %v1912, 0
      %v1958 = vsel %vm1950, %v1913, 0
      %v1961 = vsel %vm1950, %v1914, 0
      %v1964 = vsel %vm1950, %v1915, 0
      %v1967 = vsel %vm1950, %v1916, 0
      %v1970 = vsel %vm1950, %v1917, 0
      %v1973 = vsel %vm1950, %v1918, 0
      %v1976 = vsel %vm1950, %v1919, 0
      %v1979 = vsel %vm1950, %v1920, 0
      %v1982 = vsel %vm1950, %v1921, 0
      %v1985 = vsel %vm1950, %v1922, 0
      %v1988 = vsel %vm1950, %v1923, 0
      %v1991 = vsel %vm1950, %v1924, 0
      %v1994 = vsel %vm1950, %v1925, 0
      %v1997 = vsel %vm1950, %v1926, 0
      %v2000 = vsel %vm1950, %v1927, 0
      %v2003 = vsel %vm1950, %v1928, 0
      %v2006 = vsel %vm1950, %v1929, 0
      %v2009 = vsel %vm1950, %v1930, 0
      %v2012 = vsel %vm1950, %v1931, 0
      %v2015 = vsel %vm1950, %v1932, 0
      %v2018 = vsel %vm1950, %v1933, 0
      %v2021 = vsel %vm1950, %v1934, 0
      %v2024 = vsel %vm1950, %v1935, 0
      %v2027 = vsel %vm1950, %v1936, 0
      %v2030 = vsel %vm1950, %v1937, 0
      %v2033 = vsel %vm1950, %v1938, 0
      %v2036 = vsel %vm1950, %v1939, 0
      %v2039 = vsel %vm1950, %v1940, 0
      %v2042 = vsel %vm1950, %v1941, 0
      %v2045 = vsel %vm1950, %v1942, 0
      %2047 = vmatprep.subr.mxu0 0.0
      %2048 = vmatpush1.msra.mxu0 %v1943
      %2049 = vmatprep.subr.mxu0 0.0
      %2050 = vmatpush1.msra.mxu0 %v1944
      %2051 = vmatprep.subr.mxu0 0.0
      %2052 = vmatpush1.msra.mxu0 0.0
      %2053 = vmatprep.subr.mxu0 0.0
      %2054 = vmatpush1.msra.mxu0 0.0
      %2055 = vmatprep.subr.mxu0 0.0
      %2056 = vmatpush1.msra.mxu0 0.0
      %2057 = vmatprep.subr.mxu0 0.0
      %2058 = vmatpush1.msra.mxu0 0.0
      %2059 = vmatprep.subr.mxu0 0.0
      %2060 = vmatpush1.msra.mxu0 0.0
      %2061 = vmatprep.subr.mxu0 0.0
      %2062 = vmatpush1.msra.mxu0 0.0
      %2063 = vmatprep.subr.mxu0 0.0
      %2064 = vmatpush1.msra.mxu0 0.0
      %2065 = vmatprep.subr.mxu0 0.0
      %2066 = vmatpush1.msra.mxu0 0.0
      %2067 = vmatprep.subr.mxu0 0.0
      %2068 = vmatpush1.msra.mxu0 0.0
      %2069 = vmatprep.subr.mxu0 0.0
      %2070 = vmatpush1.msra.mxu0 0.0
      %2071 = vmatprep.subr.mxu0 0.0
      %2072 = vmatpush1.msra.mxu0 0.0
      %2073 = vmatprep.subr.mxu0 0.0
      %2074 = vmatpush1.msra.mxu0 0.0
      %2075 = vmatprep.subr.mxu0 0.0
      %2076 = vmatpush1.msra.mxu0 0.0
      %2077 = vmatprep.subr.mxu0 0.0
      %2078 = vmatpush1.msra.mxu0 0.0
      %2079 = vmatprep.subr.mxu0 0.0
      %2080 = vmatpush1.msra.mxu0 0.0
      %2081 = vmatprep.subr.mxu0 0.0
      %2082 = vmatpush1.msra.mxu0 0.0
      %2083 = vmatprep.subr.mxu0 0.0
      %2084 = vmatpush1.msra.mxu0 0.0
      %2085 = vmatprep.subr.mxu0 0.0
      %2086 = vmatpush1.msra.mxu0 0.0
      %2087 = vmatprep.subr.mxu0 0.0
      %2088 = vmatpush1.msra.mxu0 0.0
      %2089 = vmatprep.subr.mxu0 0.0
      %2090 = vmatpush1.msra.mxu0 0.0
      %2091 = vmatprep.subr.mxu0 0.0
      %2092 = vmatpush1.msra.mxu0 0.0
      %2093 = vmatprep.subr.mxu0 0.0
      %2094 = vmatpush1.msra.mxu0 0.0
      %2095 = vmatprep.subr.mxu0 0.0
      %2096 = vmatpush1.msra.mxu0 0.0
      %2097 = vmatprep.subr.mxu0 0.0
      %2098 = vmatpush1.msra.mxu0 0.0
      %2099 = vmatprep.subr.mxu0 0.0
      %2100 = vmatpush1.msra.mxu0 0.0
      %2101 = vmatprep.subr.mxu0 0.0
      %2102 = vmatpush1.msra.mxu0 0.0
      %2103 = vmatprep.subr.mxu0 0.0
      %2104 = vmatpush1.msra.mxu0 0.0
      %2105 = vmatprep.subr.mxu0 0.0
      %2106 = vmatpush1.msra.mxu0 0.0
      %2107 = vmatprep.subr.mxu0 0.0
      %2108 = vmatpush1.msra.mxu0 0.0
      %2109 = vmatprep.subr.mxu0 0.0
      %2110 = vmatpush1.msra.mxu0 0.0
      %2111 = vmatprep.mubr.f32.mxu0 0.0
      %2112 = vmatmul.mubr.f32.gmra.mrb[0].mxu0 %v1952
      %v2113 = vpop.f32.mrb[0].mxu0
      %v2114 = vadd.f32 %v1949, %v2113
      %v2115 = vpop.f32.mrb[0].mxu0
      %2116 = vmatprep.mubr.f32.mxu0 0.0
      %2117 = vmatmul.mubr.f32.gmra.mrb[0].mxu0 %v1955
      %v2118 = vpop.f32.mrb[0].mxu0
      %v2119 = vadd.f32 %v1949, %v2118
      %v2120 = vpop.f32.mrb[0].mxu0
      %2121 = vmatprep.mubr.f32.mxu0 0.0
      %2122 = vmatmul.mubr.f32.gmra.mrb[0].mxu0 %v1958
      %v2123 = vpop.f32.mrb[0].mxu0
      %v2124 = vadd.f32 %v1949, %v2123
      %v2125 = vpop.f32.mrb[0].mxu0
      %2126 = vmatprep.mubr.f32.mxu0 0.0
      %2127 = vmatmul.mubr.f32.gmra.mrb[0].mxu0 %v1961
      %v2128 = vpop.f32.mrb[0].mxu0
      %v2129 = vadd.f32 %v1949, %v2128
      %v2130 = vpop.f32.mrb[0].mxu0
      %2131 = vmatprep.mubr.f32.mxu0 0.0
      %2132 = vmatmul.mubr.f32.gmra.mrb[0].mxu0 %v1964
      %v2133 = vpop.f32.mrb[0].mxu0
      %v2134 = vadd.f32 %v1949, %v2133
      %v2135 = vpop.f32.mrb[0].mxu0
      %2136 = vmatprep.mubr.f32.mxu0 0.0
      %2137 = vmatmul.mubr.f32.gmra.mrb[0].mxu0 %v1967
      %v2138 = vpop.f32.mrb[0].mxu0
      %v2139 = vadd.f32 %v1949, %v2138
      %v2140 = vpop.f32.mrb[0].mxu0
      %2141 = vmatprep.mubr.f32.mxu0 0.0
      %2142 = vmatmul.mubr.f32.gmra.mrb[0].mxu0 %v1970
      %v2143 = vpop.f32.mrb[0].mxu0
      %v2144 = vadd.f32 %v1949, %v2143
      %v2145 = vpop.f32.mrb[0].mxu0
      %2146 = vmatprep.mubr.f32.mxu0 0.0
      %2147 = vmatmul.mubr.f32.gmra.mrb[0].mxu0 %v1973
      %v2148 = vpop.f32.mrb[0].mxu0
      %v2149 = vadd.f32 %v1949, %v2148
      %v2150 = vpop.f32.mrb[0].mxu0
      %2151 = vmatprep.mubr.f32.mxu0 0.0
      %2152 = vmatmul.mubr.f32.gmra.mrb[0].mxu0 %v1976
      %v2153 = vpop.f32.mrb[0].mxu0
      %v2154 = vadd.f32 %v1949, %v2153
      %v2155 = vpop.f32.mrb[0].mxu0
      %2156 = vmatprep.mubr.f32.mxu0 0.0
      %2157 = vmatmul.mubr.f32.gmra.mrb[0].mxu0 %v1979
      %v2158 = vpop.f32.mrb[0].mxu0
      %v2159 = vadd.f32 %v1949, %v2158
      %v2160 = vpop.f32.mrb[0].mxu0
      %2161 = vmatprep.mubr.f32.mxu0 0.0
      %2162 = vmatmul.mubr.f32.gmra.mrb[0].mxu0 %v1982
      %v2163 = vpop.f32.mrb[0].mxu0
      %v2164 = vadd.f32 %v1949, %v2163
      %v2165 = vpop.f32.mrb[0].mxu0
      %2166 = vmatprep.mubr.f32.mxu0 0.0
      %2167 = vmatmul.mubr.f32.gmra.mrb[0].mxu0 %v1985
      %v2168 = vpop.f32.mrb[0].mxu0
      %v2169 = vadd.f32 %v1949, %v2168
      %v2170 = vpop.f32.mrb[0].mxu0
      %2171 = vmatprep.mubr.f32.mxu0 0.0
      %2172 = vmatmul.mubr.f32.gmra.mrb[0].mxu0 %v1988
      %v2173 = vpop.f32.mrb[0].mxu0
      %v2174 = vadd.f32 %v1949, %v2173
      %v2175 = vpop.f32.mrb[0].mxu0
      %2176 = vmatprep.mubr.f32.mxu0 0.0
      %2177 = vmatmul.mubr.f32.gmra.mrb[0].mxu0 %v1991
      %v2178 = vpop.f32.mrb[0].mxu0
      %v2179 = vadd.f32 %v1949, %v2178
      %v2180 = vpop.f32.mrb[0].mxu0
      %2181 = vmatprep.mubr.f32.mxu0 0.0
      %2182 = vmatmul.mubr.f32.gmra.mrb[0].mxu0 %v1994
      %v2183 = vpop.f32.mrb[0].mxu0
      %v2184 = vadd.f32 %v1949, %v2183
      %v2185 = vpop.f32.mrb[0].mxu0
      %2186 = vmatprep.mubr.f32.mxu0 0.0
      %2187 = vmatmul.mubr.f32.gmra.mrb[0].mxu0 %v1997
      %v2188 = vpop.f32.mrb[0].mxu0
      %v2189 = vadd.f32 %v1949, %v2188
      %v2190 = vpop.f32.mrb[0].mxu0
      %2191 = vmatprep.mubr.f32.mxu0 0.0
      %2192 = vmatmul.mubr.f32.gmra.mrb[0].mxu0 %v2000
      %v2193 = vpop.f32.mrb[0].mxu0
      %v2194 = vadd.f32 %v1949, %v2193
      %v2195 = vpop.f32.mrb[0].mxu0
      %2196 = vmatprep.mubr.f32.mxu0 0.0
      %2197 = vmatmul.mubr.f32.gmra.mrb[0].mxu0 %v2003
      %v2198 = vpop.f32.mrb[0].mxu0
      %v2199 = vadd.f32 %v1949, %v2198
      %v2200 = vpop.f32.mrb[0].mxu0
      %2201 = vmatprep.mubr.f32.mxu0 0.0
      %2202 = vmatmul.mubr.f32.gmra.mrb[0].mxu0 %v2006
      %v2203 = vpop.f32.mrb[0].mxu0
      %v2204 = vadd.f32 %v1949, %v2203
      %v2205 = vpop.f32.mrb[0].mxu0
      %2206 = vmatprep.mubr.f32.mxu0 0.0
      %2207 = vmatmul.mubr.f32.gmra.mrb[0].mxu0 %v2009
      %v2208 = vpop.f32.mrb[0].mxu0
      %v2209 = vadd.f32 %v1949, %v2208
      %v2210 = vpop.f32.mrb[0].mxu0
      %2211 = vmatprep.mubr.f32.mxu0 0.0
      %2212 = vmatmul.mubr.f32.gmra.mrb[0].mxu0 %v2012
      %v2213 = vpop.f32.mrb[0].mxu0
      %v2214 = vadd.f32 %v1949, %v2213
      %v2215 = vpop.f32.mrb[0].mxu0
      %2216 = vmatprep.mubr.f32.mxu0 0.0
      %2217 = vmatmul.mubr.f32.gmra.mrb[0].mxu0 %v2015
      %v2218 = vpop.f32.mrb[0].mxu0
      %v2219 = vadd.f32 %v1949, %v2218
      %v2220 = vpop.f32.mrb[0].mxu0
      %2221 = vmatprep.mubr.f32.mxu0 0.0
      %2222 = vmatmul.mubr.f32.gmra.mrb[0].mxu0 %v2018
      %v2223 = vpop.f32.mrb[0].mxu0
      %v2224 = vadd.f32 %v1949, %v2223
      %v2225 = vpop.f32.mrb[0].mxu0
      %2226 = vmatprep.mubr.f32.mxu0 0.0
      %2227 = vmatmul.mubr.f32.gmra.mrb[0].mxu0 %v2021
      %v2228 = vpop.f32.mrb[0].mxu0
      %v2229 = vadd.f32 %v1949, %v2228
      %v2230 = vpop.f32.mrb[0].mxu0
      %2231 = vmatprep.mubr.f32.mxu0 0.0
      %2232 = vmatmul.mubr.f32.gmra.mrb[0].mxu0 %v2024
      %v2233 = vpop.f32.mrb[0].mxu0
      %v2234 = vadd.f32 %v1949, %v2233
      %v2235 = vpop.f32.mrb[0].mxu0
      %2236 = vmatprep.mubr.f32.mxu0 0.0
      %2237 = vmatmul.mubr.f32.gmra.mrb[0].mxu0 %v2027
      %v2238 = vpop.f32.mrb[0].mxu0
      %v2239 = vadd.f32 %v1949, %v2238
      %v2240 = vpop.f32.mrb[0].mxu0
      %2241 = vmatprep.mubr.f32.mxu0 0.0
      %2242 = vmatmul.mubr.f32.gmra.mrb[0].mxu0 %v2030
      %v2243 = vpop.f32.mrb[0].mxu0
      %v2244 = vadd.f32 %v1949, %v2243
      %v2245 = vpop.f32.mrb[0].mxu0
      %2246 = vmatprep.mubr.f32.mxu0 0.0
      %2247 = vmatmul.mubr.f32.gmra.mrb[0].mxu0 %v2033
      %v2248 = vpop.f32.mrb[0].mxu0
      %v2249 = vadd.f32 %v1949, %v2248
      %v2250 = vpop.f32.mrb[0].mxu0
      %2251 = vmatprep.mubr.f32.mxu0 0.0
      %2252 = vmatmul.mubr.f32.gmra.mrb[0].mxu0 %v2036
      %v2253 = vpop.f32.mrb[0].mxu0
      %v2254 = vadd.f32 %v1949, %v2253
      %v2255 = vpop.f32.mrb[0].mxu0
      %2256 = vmatprep.mubr.f32.mxu0 0.0
      %2257 = vmatmul.mubr.f32.gmra.mrb[0].mxu0 %v2039
      %v2258 = vpop.f32.mrb[0].mxu0
      %v2259 = vadd.f32 %v1949, %v2258
      %v2260 = vpop.f32.mrb[0].mxu0
      %2261 = vmatprep.mubr.f32.mxu0 0.0
      %2262 = vmatmul.mubr.f32.gmra.mrb[0].mxu0 %v2042
      %v2263 = vpop.f32.mrb[0].mxu0
      %v2264 = vadd.f32 %v1949, %v2263
      %v2265 = vpop.f32.mrb[0].mxu0
      %2266 = vmatprep.mubr.f32.mxu0 0.0
      %2267 = vmatmul.mubr.f32.gmra.mrb[0].mxu0 %v2045
      %v2268 = vpop.f32.mrb[0].mxu0
      %v2269 = vadd.f32 %v1949, %v2268
      %v2270 = vpop.f32.mrb[0].mxu0
      %2271 = vdwg.mxu0
      %vm2272 = vcmask 64512
      %2273 = vst.msk [vmem:[%s253] sm:$0xff] %vm2272, %v2114
      %2274 = vst.msk [vmem:[%s253 + $0x8] sm:$0xff] %vm2272, %v2119
      %2275 = vst.msk [vmem:[%s253 + $0x10] sm:$0xff] %vm2272, %v2124
      %2276 = vst.msk [vmem:[%s253 + $0x18] sm:$0xff] %vm2272, %v2129
      %2277 = vst.msk [vmem:[%s253 + $0x20] sm:$0xff] %vm2272, %v2134
      %2278 = vst.msk [vmem:[%s253 + $0x28] sm:$0xff] %vm2272, %v2139
      %2279 = vst.msk [vmem:[%s253 + $0x30] sm:$0xff] %vm2272, %v2144
      %2280 = vst.msk [vmem:[%s253 + $0x38] sm:$0xff] %vm2272, %v2149
      %2281 = vst.msk [vmem:[%s253 + $0x40] sm:$0xff] %vm2272, %v2154
      %2282 = vst.msk [vmem:[%s253 + $0x48] sm:$0xff] %vm2272, %v2159
      %2283 = vst.msk [vmem:[%s253 + $0x50] sm:$0xff] %vm2272, %v2164
      %2284 = vst.msk [vmem:[%s253 + $0x58] sm:$0xff] %vm2272, %v2169
      %2285 = vst.msk [vmem:[%s253 + $0x60] sm:$0xff] %vm2272, %v2174
      %2286 = vst.msk [vmem:[%s253 + $0x68] sm:$0xff] %vm2272, %v2179
      %2287 = vst.msk [vmem:[%s253 + $0x70] sm:$0xff] %vm2272, %v2184
      %2288 = vst.msk [vmem:[%s253 + $0x78] sm:$0xff] %vm2272, %v2189
      %2289 = vst.msk [vmem:[%s253 + $0x80] sm:$0xff] %vm2272, %v2194
      %2290 = vst.msk [vmem:[%s253 + $0x88] sm:$0xff] %vm2272, %v2199
      %2291 = vst.msk [vmem:[%s253 + $0x90] sm:$0xff] %vm2272, %v2204
      %2292 = vst.msk [vmem:[%s253 + $0x98] sm:$0xff] %vm2272, %v2209
      %2293 = vst.msk [vmem:[%s253 + $0xa0] sm:$0xff] %vm2272, %v2214
      %2294 = vst.msk [vmem:[%s253 + $0xa8] sm:$0xff] %vm2272, %v2219
      %2295 = vst.msk [vmem:[%s253 + $0xb0] sm:$0xff] %vm2272, %v2224
      %2296 = vst.msk [vmem:[%s253 + $0xb8] sm:$0xff] %vm2272, %v2229
      %2297 = vst.msk [vmem:[%s253 + $0xc0] sm:$0xff] %vm2272, %v2234
      %2298 = vst.msk [vmem:[%s253 + $0xc8] sm:$0xff] %vm2272, %v2239
      %2299 = vst.msk [vmem:[%s253 + $0xd0] sm:$0xff] %vm2272, %v2244
      %2300 = vst.msk [vmem:[%s253 + $0xd8] sm:$0xff] %vm2272, %v2249
      %2301 = vst.msk [vmem:[%s253 + $0xe0] sm:$0xff] %vm2272, %v2254
      %2302 = vst.msk [vmem:[%s253 + $0xe8] sm:$0xff] %vm2272, %v2259
      %2303 = vst.msk [vmem:[%s253 + $0xf0] sm:$0xff] %vm2272, %v2264
      %2304 = vst.msk [vmem:[%s253 + $0xf8] sm:$0xff] %vm2272, %v2269
      %s2305 = smul.u32 32, %s17
      %p2306 = scmp.lt.s32.totalorder %s2305, 63
      %s2307 = scalar_select %p2306, %s2305, 63
      %s2308 = smul.addr %s2307, 8
      %s2309 = scalar_lea.vmem %s6, %s2308
      // Predicated region
      $region45: #{dqn_forward.1} parent=43 // pred_check
        %p2310 = pneg %p166
      $region46: #{dqn_forward.1} parent=43 // pred_check_branch
        %2312 = sbr.rel (%p2310) target = $region48
      $region47: #{dqn_forward.1} parent=43 // pred_region
        %s2313 = smul.u32 32, %s17
      $region48: #{dqn_forward.1} parent=43 // pred_fallthru
        _
    $region44: #{dqn_forward.1} parent=5 // pred_fallthru
      _
    %p2314 = scmp.le.s32.totalorder 2, %s12
    // Predicated region
    $region49: #{dqn_forward.1} parent=5 // pred_check
      %p2315 = pneg %p2314
    $region50: #{dqn_forward.1} parent=5 // pred_check_branch
      %2317 = sbr.rel (%p2315) target = $region52
    $region51: #{dqn_forward.1} parent=5 // pred_region
      %s2318 = ssub.s32 %s12, 2
      // Predicated region
      $region53: #{dqn_forward.1} parent=51 // pred_check
        %p2319 = pneg %p172
      $region54: #{dqn_forward.1} parent=51 // pred_check_branch
        %2321 = sbr.rel (%p2319) target = $region56
      $region55: #{dqn_forward.1} parent=51 // pred_region
        %s2322 = smul.u32 32, %s18
        %p2323 = scmp.lt.s32.totalorder %s2322, 63
        %s2324 = scalar_select %p2323, %s2322, 63
        %s2325 = smul.addr %s2324, 8
        %s2326 = scalar_lea.vmem %s6, %s2325
      $region56: #{dqn_forward.1} parent=51 // pred_fallthru
        _
    $region52: #{dqn_forward.1} parent=5 // pred_fallthru
      _
  $region6: #{dqn_forward.1} parent=0 // loop_footer
    %s16 = sadd.s32 1, %s12
  $region7: #{dqn_forward.1} parent=0 // loop_footer_branch
    %11 = sbr.rel target = $region3
  $region8: #{dqn_forward.1} parent=0 // loop_exit
    _

</llo_original>
